<compile_context>
chip_gen: v6e
topology: v6e:2x2x1
jax: 0.10.0
libtpu: 0.0.40
codegen_flags: <defaults>
</compile_context>

<pallas_src>
import jax
import jax.numpy as jnp
from jax.experimental import pallas as pl
from jax.experimental.pallas import tpu as pltpu

MXU_LANE = 128  # mu_head weight is zero-padded to this many columns (MXU operand only)


# ---------------------------------------------------------------------------
# Pallas kernel: fused 3-layer MLP (fc1 -> tanh -> fc2 -> tanh -> mu_head)
# ---------------------------------------------------------------------------
def bounded_actor_kernel(x_ref, w1_ref, b1_ref, w2_ref, b2_ref,
                         wmu_ref, bmu_ref, mu_ref):
    out_dim = mu_ref.shape[-1]
    # bf16 inputs to the MXU, f32 accumulation, f32 bias/tanh (v5e-safe).
    x = x_ref[...].astype(jnp.bfloat16)                                # (TB, in)
    h1 = jnp.tanh(
        jnp.dot(x, w1_ref[...], preferred_element_type=jnp.float32)
        + b1_ref[...])                                                 # (TB, 64) f32
    h2 = jnp.tanh(
        jnp.dot(h1.astype(jnp.bfloat16), w2_ref[...],
                preferred_element_type=jnp.float32)
        + b2_ref[...])                                                 # (TB, 64) f32
    # Lane-dense MXU operand (64, 128); slice the real out_dim columns
    # in-register, add bias, then do the narrow (TB, out_dim) store.
    mu_full = jnp.dot(h2.astype(jnp.bfloat16), wmu_ref[...],
                      preferred_element_type=jnp.float32)              # (TB, 128) f32
    mu_ref[...] = (mu_full[:, :out_dim] + bmu_ref[...]).astype(mu_ref.dtype)


# ---------------------------------------------------------------------------
# Parameter prep: bf16 weights, f32 biases; mu weight padded to 128 MXU lanes
# ---------------------------------------------------------------------------
def prepare_params(params):
    """Cast weights to bf16; zero-pad mu_head weight (only) to MXU_LANE cols."""
    w1, b1, w2, b2, wmu, bmu = params
    out_dim = wmu.shape[1]
    assert out_dim <= MXU_LANE, "pad scheme assumes out_dim <= 128"
    wmu_p = jnp.pad(wmu, ((0, 0), (0, MXU_LANE - out_dim)))
    prepared = (w1.astype(jnp.bfloat16), b1.astype(jnp.float32),
                w2.astype(jnp.bfloat16), b2.astype(jnp.float32),
                wmu_p.astype(jnp.bfloat16), bmu.astype(jnp.float32))
    return prepared, out_dim


# ---------------------------------------------------------------------------
# Wrapper: batch grid, resident weights, unpadded (Bp, out_dim) output
# ---------------------------------------------------------------------------
def _round_up(n, m):
    return ((n + m - 1) // m) * m


def bounded_actor_forward(x, prepared, in_dim, tb=512):
    x = x.reshape(-1, in_dim)            # no dtype cast here (done per-tile)
    B = x.shape[0]
    w1, b1, w2, b2, wmu_p, bmu = prepared
    out_dim = bmu.shape[1]

    # Clamp the tile to the (sublane-rounded) batch so small B isn't padded
    # up to a full 512-row tile; keep tb a multiple of 8.
    tb = max(8, min(_round_up(tb, 8), _round_up(B, 8)))
    n_tiles = pl.cdiv(B, tb)
    Bp = n_tiles * tb
    if Bp != B:
        x = jnp.pad(x, ((0, Bp - B), (0, 0)))

    # Weights/biases: same (only) block every grid step -> stay VMEM-resident.
    resident = lambda arr: pl.BlockSpec(arr.shape, lambda i: (0, 0))

    hidden = w1.shape[1]
    flops = 2 * Bp * (in_dim * hidden + hidden * hidden + hidden * out_dim)
    transcendentals = 2 * Bp * hidden
    bytes_accessed = (Bp * in_dim * 4                                   # x (f32)
                      + sum(a.size * a.dtype.itemsize for a in prepared)
                      + Bp * out_dim * 4)                               # mu (f32)

    mu = pl.pallas_call(
        bounded_actor_kernel,
        out_shape=jax.ShapeDtypeStruct((Bp, out_dim), jnp.float32),
        grid=(n_tiles,),
        in_specs=[
            pl.BlockSpec((tb, in_dim), lambda i: (i, 0)),   # x: pipelined over batch
            resident(w1), resident(b1),
            resident(w2), resident(b2),
            resident(wmu_p), resident(bmu),
        ],
        out_specs=pl.BlockSpec((tb, out_dim), lambda i: (i, 0)),
        compiler_params=pltpu.CompilerParams(
            # On v7x, if plain "parallel" doesn't shard the batch axis across
            # the 2 TensorCores, switch this axis to pltpu.CORE_PARALLEL.
            dimension_semantics=("parallel",)),
        cost_estimate=pl.CostEstimate(
            flops=flops,
            transcendentals=transcendentals,
            bytes_accessed=bytes_accessed),
    )(x, w1, b1, w2, b2, wmu_p, bmu)

    return mu[:B]


# ---------------------------------------------------------------------------
# Deterministic parameter construction (mirrors the PyTorch __init__ shapes)
# ---------------------------------------------------------------------------
def orthogonal(key, rows, cols, gain=1.0):
    """Orthogonal init (like nn.init.orthogonal_), returned as (rows, cols)."""
    a = jax.random.normal(key, (max(rows, cols), min(rows, cols)), jnp.float32)
    q, r = jnp.linalg.qr(a)
    q = q * jnp.sign(jnp.diagonal(r))
    if rows < cols:
        q = q.T
    return gain * q[:rows, :cols]


def init_params(key, in_dim, hidden, out_dim):
    ks = jax.random.split(key, 8)
    # PyTorch Linear weight is (out, in); we store transposed (in, out).
    w1 = orthogonal(ks[0], hidden, in_dim).T      # (in_dim, 64)
    w2 = orthogonal(ks[1], hidden, hidden).T      # (64, 64)
    wmu = orthogonal(ks[2], out_dim, hidden).T    # (64, out_dim)

    def bias(k, fan_in, n):
        bound = 1.0 / jnp.sqrt(jnp.float32(fan_in))
        return jax.random.uniform(k, (1, n), jnp.float32, -bound, bound)

    b1 = bias(ks[3], in_dim, hidden)
    b2 = bias(ks[4], hidden, hidden)
    bmu = bias(ks[5], hidden, out_dim)
    return (w1, b1, w2, b2, wmu, bmu)


# ---------------------------------------------------------------------------
# References (pure JAX) for correctness checking
# ---------------------------------------------------------------------------
def reference_forward_f32(x, params, in_dim):
    """Exact f32 math (matches PyTorch module semantics)."""
    x = x.reshape(-1, in_dim).astype(jnp.float32)
    w1, b1, w2, b2, wmu, bmu = params
    h = jnp.tanh(x @ w1 + b1)
    h = jnp.tanh(h @ w2 + b2)
    return h @ wmu + bmu


def reference_forward_bf16(x, prepared, in_dim):
    """Same bf16-input / f32-accumulate math as the kernel."""
    x = x.reshape(-1, in_dim)
    w1, b1, w2, b2, wmu_p, bmu = prepared
    out_dim = bmu.shape[1]
    h = jnp.tanh(jnp.dot(x.astype(jnp.bfloat16), w1,
                         preferred_element_type=jnp.float32) + b1)
    h = jnp.tanh(jnp.dot(h.astype(jnp.bfloat16), w2,
                         preferred_element_type=jnp.float32) + b2)
    mu_full = jnp.dot(h.astype(jnp.bfloat16), wmu_p,
                      preferred_element_type=jnp.float32)
    return mu_full[:, :out_dim] + bmu


if __name__ == "__main__":
    in_dim, out_dim, hidden = 32, 4, 64
    batch = 1000                                   # 2 grid steps at tb=512 (+24 pad rows)
    action_low = jnp.array([-1.0] * out_dim)       # defined for parity; unused in
    action_high = jnp.array([1.0] * out_dim)       # BoundedActor.forward (like PyTorch)

    key = jax.random.PRNGKey(0)
    pkey, xkey = jax.random.split(key)
    params = init_params(pkey, in_dim, hidden, out_dim)
    prepared, out_dim = prepare_params(params)

    x = jax.random.normal(xkey, (batch, in_dim), jnp.float32)

    mu = bounded_actor_forward(x, prepared, in_dim, tb=512)
    mu = jax.block_until_ready(mu)
    assert mu.shape == (batch, out_dim)

    # Tight check vs. a reference that uses identical bf16/f32 math.
    ref_bf16 = reference_forward_bf16(x, prepared, in_dim)
    assert jnp.allclose(mu, ref_bf16, atol=1e-4, rtol=1e-4)

    # Loose sanity check vs. the exact f32 PyTorch-equivalent math.
    ref_f32 = reference_forward_f32(x, params, in_dim)
    assert jnp.allclose(mu, ref_f32, atol=5e-2, rtol=5e-2)

    print("KERNEL_OK")
</pallas_src>

<mosaic_0001>
module attributes {stable_mosaic.version = 11 : i64} {
  func.func @bounded_actor_kernel(%arg0: i32, %arg1: memref<512x32xf32, #tpu.memory_space<vmem>>, %arg2: memref<32x64xbf16, #tpu.memory_space<vmem>>, %arg3: memref<1x64xf32, #tpu.memory_space<vmem>>, %arg4: memref<64x64xbf16, #tpu.memory_space<vmem>>, %arg5: memref<1x64xf32, #tpu.memory_space<vmem>>, %arg6: memref<64x128xbf16, #tpu.memory_space<vmem>>, %arg7: memref<1x4xf32, #tpu.memory_space<vmem>>, %arg8: memref<512x4xf32, #tpu.memory_space<vmem>>) attributes {dimension_semantics = [#tpu.dimension_semantics<parallel>], iteration_bounds = array<i64: 2>, scalar_prefetch = 0 : i64, scratch_operands = 0 : i64, tpu.core_type = #tpu.core_type<tc>, window_params = [{transform_indices = @transform_0, window_bounds = array<i64: 512, 32>}, {pipeline_mode = #tpu.pipeline_mode<synchronous>, transform_indices = @transform_1, window_bounds = array<i64: 32, 64>}, {pipeline_mode = #tpu.pipeline_mode<synchronous>, transform_indices = @transform_2, window_bounds = array<i64: 1, 64>}, {pipeline_mode = #tpu.pipeline_mode<synchronous>, transform_indices = @transform_3, window_bounds = array<i64: 64, 64>}, {pipeline_mode = #tpu.pipeline_mode<synchronous>, transform_indices = @transform_4, window_bounds = array<i64: 1, 64>}, {pipeline_mode = #tpu.pipeline_mode<synchronous>, transform_indices = @transform_5, window_bounds = array<i64: 64, 128>}, {pipeline_mode = #tpu.pipeline_mode<synchronous>, transform_indices = @transform_6, window_bounds = array<i64: 1, 4>}, {transform_indices = @transform_7, window_bounds = array<i64: 512, 4>}]} {
    %c0 = arith.constant 0 : index
    %c0_0 = arith.constant 0 : index
    %0 = vector.load %arg1[%c0, %c0_0] : memref<512x32xf32, #tpu.memory_space<vmem>>, vector<512x32xf32>
    %1 = arith.truncf %0 : vector<512x32xf32> to vector<512x32xbf16>
    %c0_1 = arith.constant 0 : index
    %c0_2 = arith.constant 0 : index
    %2 = vector.load %arg2[%c0_1, %c0_2] : memref<32x64xbf16, #tpu.memory_space<vmem>>, vector<32x64xbf16>
    %cst = arith.constant dense<0.000000e+00> : vector<512x64xf32>
    %3 = tpu.matmul %1, %2, %cst {dimension_numbers = #tpu.dot_dimension_numbers<[1], [0], [0], [1], [0, 0, 1, 1], [], []>} : vector<512x32xbf16>, vector<32x64xbf16>, vector<512x64xf32> -> vector<512x64xf32>
    %c0_3 = arith.constant 0 : index
    %c0_4 = arith.constant 0 : index
    %4 = vector.load %arg3[%c0_3, %c0_4] : memref<1x64xf32, #tpu.memory_space<vmem>>, vector<1x64xf32>
    %5 = vector.broadcast %4 : vector<1x64xf32> to vector<512x64xf32>
    %6 = arith.addf %3, %5 : vector<512x64xf32>
    %7 = math.tanh %6 : vector<512x64xf32>
    %8 = arith.truncf %7 : vector<512x64xf32> to vector<512x64xbf16>
    %c0_5 = arith.constant 0 : index
    %c0_6 = arith.constant 0 : index
    %9 = vector.load %arg4[%c0_5, %c0_6] : memref<64x64xbf16, #tpu.memory_space<vmem>>, vector<64x64xbf16>
    %cst_7 = arith.constant dense<0.000000e+00> : vector<512x64xf32>
    %10 = tpu.matmul %8, %9, %cst_7 {dimension_numbers = #tpu.dot_dimension_numbers<[1], [0], [0], [1], [0, 0, 1, 1], [], []>} : vector<512x64xbf16>, vector<64x64xbf16>, vector<512x64xf32> -> vector<512x64xf32>
    %c0_8 = arith.constant 0 : index
    %c0_9 = arith.constant 0 : index
    %11 = vector.load %arg5[%c0_8, %c0_9] : memref<1x64xf32, #tpu.memory_space<vmem>>, vector<1x64xf32>
    %12 = vector.broadcast %11 : vector<1x64xf32> to vector<512x64xf32>
    %13 = arith.addf %10, %12 : vector<512x64xf32>
    %14 = math.tanh %13 : vector<512x64xf32>
    %15 = arith.truncf %14 : vector<512x64xf32> to vector<512x64xbf16>
    %c0_10 = arith.constant 0 : index
    %c0_11 = arith.constant 0 : index
    %16 = vector.load %arg6[%c0_10, %c0_11] : memref<64x128xbf16, #tpu.memory_space<vmem>>, vector<64x128xbf16>
    %cst_12 = arith.constant dense<0.000000e+00> : vector<512x128xf32>
    %17 = tpu.matmul %15, %16, %cst_12 {dimension_numbers = #tpu.dot_dimension_numbers<[1], [0], [0], [1], [0, 0, 1, 1], [], []>} : vector<512x64xbf16>, vector<64x128xbf16>, vector<512x128xf32> -> vector<512x128xf32>
    %18 = vector.extract_strided_slice %17 {offsets = [0, 0], sizes = [512, 4], strides = [1, 1]} : vector<512x128xf32> to vector<512x4xf32>
    %c0_13 = arith.constant 0 : index
    %c0_14 = arith.constant 0 : index
    %19 = vector.load %arg7[%c0_13, %c0_14] : memref<1x4xf32, #tpu.memory_space<vmem>>, vector<1x4xf32>
    %20 = vector.broadcast %19 : vector<1x4xf32> to vector<512x4xf32>
    %21 = arith.addf %18, %20 : vector<512x4xf32>
    %c0_15 = arith.constant 0 : index
    %c0_16 = arith.constant 0 : index
    %22 = vector.load %arg8[%c0_15, %c0_16] : memref<512x4xf32, #tpu.memory_space<vmem>>, vector<512x4xf32>
    tpu.vector_store %arg8[%c0_15, %c0_16], %21 {strides = array<i32>} : memref<512x4xf32, #tpu.memory_space<vmem>>, vector<512x4xf32>,
    return
  }
  func.func @transform_0(%arg0: i32) -> (i32, i32) {
    %c0_i32 = arith.constant 0 : i32
    %c0_i32_0 = arith.constant 0 : i32
    return %arg0, %c0_i32 : i32, i32
  }
  func.func @transform_1(%arg0: i32) -> (i32, i32) {
    %c0_i32 = arith.constant 0 : i32
    %c0_i32_0 = arith.constant 0 : i32
    %c0_i32_1 = arith.constant 0 : i32
    return %c0_i32, %c0_i32_0 : i32, i32
  }
  func.func @transform_2(%arg0: i32) -> (i32, i32) {
    %c0_i32 = arith.constant 0 : i32
    %c0_i32_0 = arith.constant 0 : i32
    %c0_i32_1 = arith.constant 0 : i32
    return %c0_i32, %c0_i32_0 : i32, i32
  }
  func.func @transform_3(%arg0: i32) -> (i32, i32) {
    %c0_i32 = arith.constant 0 : i32
    %c0_i32_0 = arith.constant 0 : i32
    %c0_i32_1 = arith.constant 0 : i32
    return %c0_i32, %c0_i32_0 : i32, i32
  }
  func.func @transform_4(%arg0: i32) -> (i32, i32) {
    %c0_i32 = arith.constant 0 : i32
    %c0_i32_0 = arith.constant 0 : i32
    %c0_i32_1 = arith.constant 0 : i32
    return %c0_i32, %c0_i32_0 : i32, i32
  }
  func.func @transform_5(%arg0: i32) -> (i32, i32) {
    %c0_i32 = arith.constant 0 : i32
    %c0_i32_0 = arith.constant 0 : i32
    %c0_i32_1 = arith.constant 0 : i32
    return %c0_i32, %c0_i32_0 : i32, i32
  }
  func.func @transform_6(%arg0: i32) -> (i32, i32) {
    %c0_i32 = arith.constant 0 : i32
    %c0_i32_0 = arith.constant 0 : i32
    %c0_i32_1 = arith.constant 0 : i32
    return %c0_i32, %c0_i32_0 : i32, i32
  }
  func.func @transform_7(%arg0: i32) -> (i32, i32) {
    %c0_i32 = arith.constant 0 : i32
    %c0_i32_0 = arith.constant 0 : i32
    return %arg0, %c0_i32 : i32, i32
  }
}

</mosaic_0001>

<llo_original>
// kernel: tpu_custom_call.1
$region0: #{tpu_custom_call.1}
  #allocation0 [shape = 'u32[]', space=smem, size = 0x4, offset = 0x4, fixed_abs, tag = 'smem constant byte address 0x4 - core index']
  #allocation1 [shape = 'u32[144,128]{1,0:T(1,128)}', space=vmem, size = 0x12000, scoped, tag = 'internal scratch']
  %s0 = inlined_call_operand.vmem [shape: f32[1024,32], index: 0, kind: input, shape index: {}]
  %s1 = inlined_call_operand.vmem [shape: bf16[32,64], index: 1, kind: input, shape index: {}]
  %s2 = inlined_call_operand.vmem [shape: f32[1,64], index: 2, kind: input, shape index: {}]
  %s3 = inlined_call_operand.vmem [shape: bf16[64,64], index: 3, kind: input, shape index: {}]
  %s4 = inlined_call_operand.vmem [shape: f32[1,64], index: 4, kind: input, shape index: {}]
  %s5 = inlined_call_operand.vmem [shape: bf16[64,128], index: 5, kind: input, shape index: {}]
  %s6 = inlined_call_operand.vmem [shape: f32[1,4], index: 6, kind: input, shape index: {}]
  %s7 = inlined_call_operand.vmem [shape: f32[1024,4], index: 7, kind: output, shape index: {}]
  %s8 = sld [smem:[#allocation0]]
  $region61: #{tpu_custom_call.1} parent=0
    _
  %s10 = ssub.s32 1, %s8
  %s11 = scalar_select 0, %s10, %s8
  loop: start=0, step=1, limit=4
  $region2: #{tpu_custom_call.1} parent=0 // loop_pre_header
    _
  $region3: #{tpu_custom_call.1} parent=0 // loop_header
    %s13 = sphi 0, %s17
    %p14 = scmp.ge.s32.totalorder %s13, 4
    %s23 = sphi 0, %s25
    %s26 = sphi 0, %s23
    %s27 = sphi 0, %s26
    %s43 = sphi 0, %s27
    %s47 = sphi 0, %s47
    %s49 = sphi 0, %s47
    %s50 = sphi 0, %s49
    %s64 = sphi 0, %s50
    %s68 = sphi 0, %s68
    %s70 = sphi 0, %s68
    %s71 = sphi 0, %s70
    %s85 = sphi 0, %s71
    %s89 = sphi 0, %s89
    %s91 = sphi 0, %s89
    %s92 = sphi 0, %s91
    %s106 = sphi 0, %s92
    %s110 = sphi 0, %s110
    %s112 = sphi 0, %s110
    %s113 = sphi 0, %s112
    %s127 = sphi 0, %s113
    %s131 = sphi 0, %s131
    %s133 = sphi 0, %s131
    %s134 = sphi 0, %s133
    %s148 = sphi 0, %s134
    %s152 = sphi 0, %s152
    %s154 = sphi 0, %s152
    %s155 = sphi 0, %s154
    %s169 = sphi 0, %s155
    %s175 = sphi 0, %s177
    %s178 = sphi 0, %s175
    %s179 = sphi 0, %s178
    %s195 = sphi 0, %s179
  $region4: #{tpu_custom_call.1} parent=0 // loop_header_branch
    %16 = sbr.rel (%p14) target = $region8
  $region5: #{tpu_custom_call.1} parent=0 // loop_body
    %s18 = ssub.s32 %s13, 1
    %s19 = ssub.s32 %s13, 2
    %s20 = sadd.s32 %s13, 1
    %s21 = ssub.s32 %s13, %s20
    %p22 = scmp.eq.s32.totalorder %s21, 0
    %s24 = sadd.s32 %s23, 1
    %s25 = scalar_select %p22, %s23, %s24
    %p28 = pneg %p22
    %p29 = scmp.eq.s32.totalorder %s13, 1
    %p30 = por %p28, %p29
    %p31 = scmp.ne.s32.totalorder %s23, %s26
    %p32 = scmp.eq.s32.totalorder %s13, 0
    %p33 = por %p31, %p32
    %p34 = scmp.ne.s32.totalorder %s23, %s26
    %p35 = scmp.eq.s32.totalorder %s18, 1
    %p36 = por %p34, %p35
    %p37 = scmp.ne.s32.totalorder %s26, %s27
    %p38 = scmp.eq.s32.totalorder %s18, 0
    %p39 = por %p37, %p38
    %p40 = scmp.ne.s32.totalorder %s26, %s27
    %p41 = scmp.eq.s32.totalorder %s19, 1
    %p42 = por %p40, %p41
    %p44 = scmp.ne.s32.totalorder %s27, %s43
    %p45 = scmp.eq.s32.totalorder %s19, 0
    %p46 = por %p44, %p45
    %s48 = sadd.s32 %s47, 1
    %p51 = scmp.eq.s32.totalorder %s13, 1
    %p52 = scmp.ne.s32.totalorder %s47, %s49
    %p53 = scmp.eq.s32.totalorder %s13, 0
    %p54 = por %p52, %p53
    %p55 = scmp.ne.s32.totalorder %s47, %s49
    %p56 = scmp.eq.s32.totalorder %s18, 1
    %p57 = por %p55, %p56
    %p58 = scmp.ne.s32.totalorder %s49, %s50
    %p59 = scmp.eq.s32.totalorder %s18, 0
    %p60 = por %p58, %p59
    %p61 = scmp.ne.s32.totalorder %s49, %s50
    %p62 = scmp.eq.s32.totalorder %s19, 1
    %p63 = por %p61, %p62
    %p65 = scmp.ne.s32.totalorder %s50, %s64
    %p66 = scmp.eq.s32.totalorder %s19, 0
    %p67 = por %p65, %p66
    %s69 = sadd.s32 %s68, 1
    %p72 = scmp.eq.s32.totalorder %s13, 1
    %p73 = scmp.ne.s32.totalorder %s68, %s70
    %p74 = scmp.eq.s32.totalorder %s13, 0
    %p75 = por %p73, %p74
    %p76 = scmp.ne.s32.totalorder %s68, %s70
    %p77 = scmp.eq.s32.totalorder %s18, 1
    %p78 = por %p76, %p77
    %p79 = scmp.ne.s32.totalorder %s70, %s71
    %p80 = scmp.eq.s32.totalorder %s18, 0
    %p81 = por %p79, %p80
    %p82 = scmp.ne.s32.totalorder %s70, %s71
    %p83 = scmp.eq.s32.totalorder %s19, 1
    %p84 = por %p82, %p83
    %p86 = scmp.ne.s32.totalorder %s71, %s85
    %p87 = scmp.eq.s32.totalorder %s19, 0
    %p88 = por %p86, %p87
    %s90 = sadd.s32 %s89, 1
    %p93 = scmp.eq.s32.totalorder %s13, 1
    %p94 = scmp.ne.s32.totalorder %s89, %s91
    %p95 = scmp.eq.s32.totalorder %s13, 0
    %p96 = por %p94, %p95
    %p97 = scmp.ne.s32.totalorder %s89, %s91
    %p98 = scmp.eq.s32.totalorder %s18, 1
    %p99 = por %p97, %p98
    %p100 = scmp.ne.s32.totalorder %s91, %s92
    %p101 = scmp.eq.s32.totalorder %s18, 0
    %p102 = por %p100, %p101
    %p103 = scmp.ne.s32.totalorder %s91, %s92
    %p104 = scmp.eq.s32.totalorder %s19, 1
    %p105 = por %p103, %p104
    %p107 = scmp.ne.s32.totalorder %s92, %s106
    %p108 = scmp.eq.s32.totalorder %s19, 0
    %p109 = por %p107, %p108
    %s111 = sadd.s32 %s110, 1
    %p114 = scmp.eq.s32.totalorder %s13, 1
    %p115 = scmp.ne.s32.totalorder %s110, %s112
    %p116 = scmp.eq.s32.totalorder %s13, 0
    %p117 = por %p115, %p116
    %p118 = scmp.ne.s32.totalorder %s110, %s112
    %p119 = scmp.eq.s32.totalorder %s18, 1
    %p120 = por %p118, %p119
    %p121 = scmp.ne.s32.totalorder %s112, %s113
    %p122 = scmp.eq.s32.totalorder %s18, 0
    %p123 = por %p121, %p122
    %p124 = scmp.ne.s32.totalorder %s112, %s113
    %p125 = scmp.eq.s32.totalorder %s19, 1
    %p126 = por %p124, %p125
    %p128 = scmp.ne.s32.totalorder %s113, %s127
    %p129 = scmp.eq.s32.totalorder %s19, 0
    %p130 = por %p128, %p129
    %s132 = sadd.s32 %s131, 1
    %p135 = scmp.eq.s32.totalorder %s13, 1
    %p136 = scmp.ne.s32.totalorder %s131, %s133
    %p137 = scmp.eq.s32.totalorder %s13, 0
    %p138 = por %p136, %p137
    %p139 = scmp.ne.s32.totalorder %s131, %s133
    %p140 = scmp.eq.s32.totalorder %s18, 1
    %p141 = por %p139, %p140
    %p142 = scmp.ne.s32.totalorder %s133, %s134
    %p143 = scmp.eq.s32.totalorder %s18, 0
    %p144 = por %p142, %p143
    %p145 = scmp.ne.s32.totalorder %s133, %s134
    %p146 = scmp.eq.s32.totalorder %s19, 1
    %p147 = por %p145, %p146
    %p149 = scmp.ne.s32.totalorder %s134, %s148
    %p150 = scmp.eq.s32.totalorder %s19, 0
    %p151 = por %p149, %p150
    %s153 = sadd.s32 %s152, 1
    %p156 = scmp.eq.s32.totalorder %s13, 1
    %p157 = scmp.ne.s32.totalorder %s152, %s154
    %p158 = scmp.eq.s32.totalorder %s13, 0
    %p159 = por %p157, %p158
    %p160 = scmp.ne.s32.totalorder %s152, %s154
    %p161 = scmp.eq.s32.totalorder %s18, 1
    %p162 = por %p160, %p161
    %p163 = scmp.ne.s32.totalorder %s154, %s155
    %p164 = scmp.eq.s32.totalorder %s18, 0
    %p165 = por %p163, %p164
    %p166 = scmp.ne.s32.totalorder %s154, %s155
    %p167 = scmp.eq.s32.totalorder %s19, 1
    %p168 = por %p166, %p167
    %p170 = scmp.ne.s32.totalorder %s155, %s169
    %p171 = scmp.eq.s32.totalorder %s19, 0
    %p172 = por %p170, %p171
    %s173 = ssub.s32 %s13, %s20
    %p174 = scmp.eq.s32.totalorder %s173, 0
    %s176 = sadd.s32 %s175, 1
    %s177 = scalar_select %p174, %s175, %s176
    %p180 = pneg %p174
    %p181 = scmp.eq.s32.totalorder %s13, 1
    %p182 = por %p180, %p181
    %p183 = scmp.ne.s32.totalorder %s175, %s178
    %p184 = scmp.eq.s32.totalorder %s13, 0
    %p185 = por %p183, %p184
    %p186 = scmp.ne.s32.totalorder %s175, %s178
    %p187 = scmp.eq.s32.totalorder %s18, 1
    %p188 = por %p186, %p187
    %p189 = scmp.ne.s32.totalorder %s178, %s179
    %p190 = scmp.eq.s32.totalorder %s18, 0
    %p191 = por %p189, %p190
    %p192 = scmp.ne.s32.totalorder %s178, %s179
    %p193 = scmp.eq.s32.totalorder %s19, 1
    %p194 = por %p192, %p193
    %p196 = scmp.ne.s32.totalorder %s179, %s195
    %p197 = scmp.eq.s32.totalorder %s19, 0
    %p198 = por %p196, %p197
    %p199 = scmp.le.s32.totalorder 1, %s13
    %p200 = scmp.lt.s32.totalorder %s13, 3
    %p201 = pnand %p199, %p200
    %p202 = pneg %p201
    // Predicated region
    $region9: #{tpu_custom_call.1} parent=5 // pred_check
      _
    $region10: #{tpu_custom_call.1} parent=5 // pred_check_branch
      %204 = sbr.rel (%p201) target = $region12
    $region11: #{tpu_custom_call.1} parent=5 // pred_region
      %s205 = ssub.s32 %s13, 1
      // Predicated region
      $region13: #{tpu_custom_call.1} parent=11 // pred_check
        %p206 = pneg %p60
      $region14: #{tpu_custom_call.1} parent=11 // pred_check_branch
        %208 = sbr.rel (%p206) target = $region16
      $region15: #{tpu_custom_call.1} parent=11 // pred_region
        _
      $region16: #{tpu_custom_call.1} parent=11 // pred_fallthru
        _
      // Predicated region
      $region17: #{tpu_custom_call.1} parent=11 // pred_check
        %p209 = pneg %p81
      $region18: #{tpu_custom_call.1} parent=11 // pred_check_branch
        %211 = sbr.rel (%p209) target = $region20
      $region19: #{tpu_custom_call.1} parent=11 // pred_region
        _
      $region20: #{tpu_custom_call.1} parent=11 // pred_fallthru
        _
      // Predicated region
      $region21: #{tpu_custom_call.1} parent=11 // pred_check
        %p212 = pneg %p102
      $region22: #{tpu_custom_call.1} parent=11 // pred_check_branch
        %214 = sbr.rel (%p212) target = $region24
      $region23: #{tpu_custom_call.1} parent=11 // pred_region
        _
      $region24: #{tpu_custom_call.1} parent=11 // pred_fallthru
        _
      // Predicated region
      $region25: #{tpu_custom_call.1} parent=11 // pred_check
        %p215 = pneg %p123
      $region26: #{tpu_custom_call.1} parent=11 // pred_check_branch
        %217 = sbr.rel (%p215) target = $region28
      $region27: #{tpu_custom_call.1} parent=11 // pred_region
        _
      $region28: #{tpu_custom_call.1} parent=11 // pred_fallthru
        _
      // Predicated region
      $region29: #{tpu_custom_call.1} parent=11 // pred_check
        %p218 = pneg %p144
      $region30: #{tpu_custom_call.1} parent=11 // pred_check_branch
        %220 = sbr.rel (%p218) target = $region32
      $region31: #{tpu_custom_call.1} parent=11 // pred_region
        _
      $region32: #{tpu_custom_call.1} parent=11 // pred_fallthru
        _
      // Predicated region
      $region33: #{tpu_custom_call.1} parent=11 // pred_check
        %p221 = pneg %p165
      $region34: #{tpu_custom_call.1} parent=11 // pred_check_branch
        %223 = sbr.rel (%p221) target = $region36
      $region35: #{tpu_custom_call.1} parent=11 // pred_region
        _
      $region36: #{tpu_custom_call.1} parent=11 // pred_fallthru
        _
    $region12: #{tpu_custom_call.1} parent=5 // pred_fallthru
      _
    %p224 = scmp.lt.s32.totalorder %s13, 2
    // Predicated region
    $region37: #{tpu_custom_call.1} parent=5 // pred_check
      %p225 = pneg %p224
    $region38: #{tpu_custom_call.1} parent=5 // pred_check_branch
      %227 = sbr.rel (%p225) target = $region40
    $region39: #{tpu_custom_call.1} parent=5 // pred_region
      // Predicated region
      $region41: #{tpu_custom_call.1} parent=39 // pred_check
        %p228 = pneg %p33
      $region42: #{tpu_custom_call.1} parent=39 // pred_check_branch
        %230 = sbr.rel (%p228) target = $region44
      $region43: #{tpu_custom_call.1} parent=39 // pred_region
        %s231 = smul.u32 64, %s13
        %p232 = scmp.lt.s32.totalorder %s231, 127
        %s233 = scalar_select %p232, %s231, 127
        %s234 = smul.addr %s233, 8
        %s235 = scalar_lea.vmem %s0, %s234
        %s236 = smul.u32 64, %s13
      $region44: #{tpu_custom_call.1} parent=39 // pred_fallthru
        _
    $region40: #{tpu_custom_call.1} parent=5 // pred_fallthru
      _
    %p237 = scmp.le.s32.totalorder 1, %s13
    %p238 = scmp.lt.s32.totalorder %s13, 3
    %p239 = pnand %p237, %p238
    %p240 = pneg %p239
    // Predicated region
    $region45: #{tpu_custom_call.1} parent=5 // pred_check
      _
    $region46: #{tpu_custom_call.1} parent=5 // pred_check_branch
      %242 = sbr.rel (%p239) target = $region48
    $region47: #{tpu_custom_call.1} parent=5 // pred_region
      %s243 = ssub.s32 %s13, 1
      %s244 = smul.u32 64, %s18
      %p245 = scmp.lt.s32.totalorder %s244, 127
      %s246 = scalar_select %p245, %s244, 127
      %s247 = smul.addr %s246, 8
      %s248 = scalar_lea.vmem %s0, %s247
      %p249 = pneg %p39
      %p250 = pneg %p36
      %p251 = pneg %p60
      %p252 = pneg %p57
      %p253 = pneg %p81
      %p254 = pneg %p78
      %p255 = pneg %p102
      %p256 = pneg %p99
      %p257 = pneg %p123
      %p258 = pneg %p120
      %p259 = pneg %p144
      %p260 = pneg %p141
      %p261 = pneg %p165
      %p262 = pneg %p162
      %p263 = pneg %p191
      %p264 = pneg %p188
      %s265 = smul.u32 64, %s18
      %p266 = scmp.lt.s32.totalorder %s265, 127
      %s267 = scalar_select %p266, %s265, 127
      %s268 = smul.addr %s267, 8
      %s269 = scalar_lea.vmem %s7, %s268
      %s270 = smul.u32 64, %s18
      %p271 = scmp.lt.s32.totalorder %s270, 127
      %s272 = scalar_select %p271, %s270, 127
      %s273 = smul.addr %s272, 8
      %s274 = scalar_lea.vmem %s0, %s273
      %s275 = smul.u32 64, %s18
      %s276 = smul.u32 64, %s18
      %p277 = scmp.lt.s32.totalorder %s276, 127
      %s278 = scalar_select %p277, %s276, 127
      %s279 = smul.addr %s278, 8
      %s280 = scalar_lea.vmem %s7, %s279
      %s281 = smul.u32 64, %s18
      %v283 = vld [vmem:[%s274] sm:$0xff]
      %v284 = vld [vmem:[%s274 + $0x8] sm:$0xff]
      %v285 = vld [vmem:[%s274 + $0x10] sm:$0xff]
      %v286 = vld [vmem:[%s274 + $0x18] sm:$0xff]
      %v287 = vld [vmem:[%s274 + $0x20] sm:$0xff]
      %v288 = vld [vmem:[%s274 + $0x28] sm:$0xff]
      %v289 = vld [vmem:[%s274 + $0x30] sm:$0xff]
      %v290 = vld [vmem:[%s274 + $0x38] sm:$0xff]
      %v291 = vld [vmem:[%s274 + $0x40] sm:$0xff]
      %v292 = vld [vmem:[%s274 + $0x48] sm:$0xff]
      %v293 = vld [vmem:[%s274 + $0x50] sm:$0xff]
      %v294 = vld [vmem:[%s274 + $0x58] sm:$0xff]
      %v295 = vld [vmem:[%s274 + $0x60] sm:$0xff]
      %v296 = vld [vmem:[%s274 + $0x68] sm:$0xff]
      %v297 = vld [vmem:[%s274 + $0x70] sm:$0xff]
      %v298 = vld [vmem:[%s274 + $0x78] sm:$0xff]
      %v299 = vld [vmem:[%s274 + $0x80] sm:$0xff]
      %v300 = vld [vmem:[%s274 + $0x88] sm:$0xff]
      %v301 = vld [vmem:[%s274 + $0x90] sm:$0xff]
      %v302 = vld [vmem:[%s274 + $0x98] sm:$0xff]
      %v303 = vld [vmem:[%s274 + $0xa0] sm:$0xff]
      %v304 = vld [vmem:[%s274 + $0xa8] sm:$0xff]
      %v305 = vld [vmem:[%s274 + $0xb0] sm:$0xff]
      %v306 = vld [vmem:[%s274 + $0xb8] sm:$0xff]
      %v307 = vld [vmem:[%s274 + $0xc0] sm:$0xff]
      %v308 = vld [vmem:[%s274 + $0xc8] sm:$0xff]
      %v309 = vld [vmem:[%s274 + $0xd0] sm:$0xff]
      %v310 = vld [vmem:[%s274 + $0xd8] sm:$0xff]
      %v311 = vld [vmem:[%s274 + $0xe0] sm:$0xff]
      %v312 = vld [vmem:[%s274 + $0xe8] sm:$0xff]
      %v313 = vld [vmem:[%s274 + $0xf0] sm:$0xff]
      %v314 = vld [vmem:[%s274 + $0xf8] sm:$0xff]
      %v315 = vld [vmem:[%s274 + $0x100] sm:$0xff]
      %v316 = vld [vmem:[%s274 + $0x108] sm:$0xff]
      %v317 = vld [vmem:[%s274 + $0x110] sm:$0xff]
      %v318 = vld [vmem:[%s274 + $0x118] sm:$0xff]
      %v319 = vld [vmem:[%s274 + $0x120] sm:$0xff]
      %v320 = vld [vmem:[%s274 + $0x128] sm:$0xff]
      %v321 = vld [vmem:[%s274 + $0x130] sm:$0xff]
      %v322 = vld [vmem:[%s274 + $0x138] sm:$0xff]
      %v323 = vld [vmem:[%s274 + $0x140] sm:$0xff]
      %v324 = vld [vmem:[%s274 + $0x148] sm:$0xff]
      %v325 = vld [vmem:[%s274 + $0x150] sm:$0xff]
      %v326 = vld [vmem:[%s274 + $0x158] sm:$0xff]
      %v327 = vld [vmem:[%s274 + $0x160] sm:$0xff]
      %v328 = vld [vmem:[%s274 + $0x168] sm:$0xff]
      %v329 = vld [vmem:[%s274 + $0x170] sm:$0xff]
      %v330 = vld [vmem:[%s274 + $0x178] sm:$0xff]
      %v331 = vld [vmem:[%s274 + $0x180] sm:$0xff]
      %v332 = vld [vmem:[%s274 + $0x188] sm:$0xff]
      %v333 = vld [vmem:[%s274 + $0x190] sm:$0xff]
      %v334 = vld [vmem:[%s274 + $0x198] sm:$0xff]
      %v335 = vld [vmem:[%s274 + $0x1a0] sm:$0xff]
      %v336 = vld [vmem:[%s274 + $0x1a8] sm:$0xff]
      %v337 = vld [vmem:[%s274 + $0x1b0] sm:$0xff]
      %v338 = vld [vmem:[%s274 + $0x1b8] sm:$0xff]
      %v339 = vld [vmem:[%s274 + $0x1c0] sm:$0xff]
      %v340 = vld [vmem:[%s274 + $0x1c8] sm:$0xff]
      %v341 = vld [vmem:[%s274 + $0x1d0] sm:$0xff]
      %v342 = vld [vmem:[%s274 + $0x1d8] sm:$0xff]
      %v343 = vld [vmem:[%s274 + $0x1e0] sm:$0xff]
      %v344 = vld [vmem:[%s274 + $0x1e8] sm:$0xff]
      %v345 = vld [vmem:[%s274 + $0x1f0] sm:$0xff]
      %v346 = vld [vmem:[%s274 + $0x1f8] sm:$0xff]
      %v347 = vpack.c.bf16 %v284, %v283
      %v348 = vpack.c.bf16 %v286, %v285
      %v349 = vpack.c.bf16 %v288, %v287
      %v350 = vpack.c.bf16 %v290, %v289
      %v351 = vpack.c.bf16 %v292, %v291
      %v352 = vpack.c.bf16 %v294, %v293
      %v353 = vpack.c.bf16 %v296, %v295
      %v354 = vpack.c.bf16 %v298, %v297
      %v355 = vpack.c.bf16 %v300, %v299
      %v356 = vpack.c.bf16 %v302, %v301
      %v357 = vpack.c.bf16 %v304, %v303
      %v358 = vpack.c.bf16 %v306, %v305
      %v359 = vpack.c.bf16 %v308, %v307
      %v360 = vpack.c.bf16 %v310, %v309
      %v361 = vpack.c.bf16 %v312, %v311
      %v362 = vpack.c.bf16 %v314, %v313
      %v363 = vpack.c.bf16 %v316, %v315
      %v364 = vpack.c.bf16 %v318, %v317
      %v365 = vpack.c.bf16 %v320, %v319
      %v366 = vpack.c.bf16 %v322, %v321
      %v367 = vpack.c.bf16 %v324, %v323
      %v368 = vpack.c.bf16 %v326, %v325
      %v369 = vpack.c.bf16 %v328, %v327
      %v370 = vpack.c.bf16 %v330, %v329
      %v371 = vpack.c.bf16 %v332, %v331
      %v372 = vpack.c.bf16 %v334, %v333
      %v373 = vpack.c.bf16 %v336, %v335
      %v374 = vpack.c.bf16 %v338, %v337
      %v375 = vpack.c.bf16 %v340, %v339
      %v376 = vpack.c.bf16 %v342, %v341
      %v377 = vpack.c.bf16 %v344, %v343
      %v378 = vpack.c.bf16 %v346, %v345
      %v379 = vld [vmem:[%s1] sm:$0xf]
      %v380 = vld [vmem:[%s1 + $0x4] sm:$0xf]
      %v381 = vld [vmem:[%s1 + $0x8] sm:$0xf]
      %v382 = vld [vmem:[%s1 + $0xc] sm:$0xf]
      %v383 = vld [vmem:[%s2] sm:$0x1]
      %v385 = vlaneseq
      %v386 = vshrl.u32 %v385, 7
      %v387 = vsub.s32 0, %v386
      %v388 = vrot.slane %v383, %v387
      %v394 = vunpack.c.l.b16 %v379
      %v395 = vunpack.c.l.b16 %v380
      %v396 = vunpack.c.l.b16 %v381
      %v397 = vunpack.c.l.b16 %v382
      %v398 = vpack.c.b16 %v395, %v394
      %v399 = vpack.c.b16 %v397, %v396
      %vm402 = vcmask 261120
      %v404 = vsel %vm402, %v347, 0
      %v407 = vsel %vm402, %v348, 0
      %v410 = vsel %vm402, %v349, 0
      %v413 = vsel %vm402, %v350, 0
      %v416 = vsel %vm402, %v351, 0
      %v419 = vsel %vm402, %v352, 0
      %v422 = vsel %vm402, %v353, 0
      %v425 = vsel %vm402, %v354, 0
      %v428 = vsel %vm402, %v355, 0
      %v431 = vsel %vm402, %v356, 0
      %v434 = vsel %vm402, %v357, 0
      %v437 = vsel %vm402, %v358, 0
      %v440 = vsel %vm402, %v359, 0
      %v443 = vsel %vm402, %v360, 0
      %v446 = vsel %vm402, %v361, 0
      %v449 = vsel %vm402, %v362, 0
      %v452 = vsel %vm402, %v363, 0
      %v455 = vsel %vm402, %v364, 0
      %v458 = vsel %vm402, %v365, 0
      %v461 = vsel %vm402, %v366, 0
      %v464 = vsel %vm402, %v367, 0
      %v467 = vsel %vm402, %v368, 0
      %v470 = vsel %vm402, %v369, 0
      %v473 = vsel %vm402, %v370, 0
      %v476 = vsel %vm402, %v371, 0
      %v479 = vsel %vm402, %v372, 0
      %v482 = vsel %vm402, %v373, 0
      %v485 = vsel %vm402, %v374, 0
      %v488 = vsel %vm402, %v375, 0
      %v491 = vsel %vm402, %v376, 0
      %v494 = vsel %vm402, %v377, 0
      %v497 = vsel %vm402, %v378, 0
      %499 = vmatprep.subr.bf16.mxu0 0
      %500 = vmatpush1.bf16.msra.mxu0 0
      %501 = vmatprep.subr.bf16.mxu0 0
      %502 = vmatpush1.bf16.msra.mxu0 0
      %503 = vmatprep.subr.bf16.mxu0 0
      %504 = vmatpush1.bf16.msra.mxu0 0
      %505 = vmatprep.subr.bf16.mxu0 0
      %506 = vmatpush1.bf16.msra.mxu0 0
      %507 = vmatprep.subr.bf16.mxu0 0
      %508 = vmatpush1.bf16.msra.mxu0 0
      %509 = vmatprep.subr.bf16.mxu0 0
      %510 = vmatpush1.bf16.msra.mxu0 0
      %511 = vmatprep.subr.bf16.mxu0 0
      %512 = vmatpush1.bf16.msra.mxu0 %v399
      %513 = vmatprep.subr.bf16.mxu0 0
      %514 = vmatpush1.bf16.msra.mxu0 %v398
      %515 = vmatprep.subr.bf16.mxu0 0
      %516 = vmatpush2.bf16.msra.mxu0 0
      %517 = vmatprep.subr.bf16.mxu0 0
      %518 = vmatpush2.bf16.msra.mxu0 0
      %519 = vmatprep.subr.bf16.mxu0 0
      %520 = vmatpush2.bf16.msra.mxu0 0
      %521 = vmatprep.subr.bf16.mxu0 0
      %522 = vmatpush2.bf16.msra.mxu0 0
      %523 = vmatprep.subr.bf16.mxu0 0
      %524 = vmatpush2.bf16.msra.mxu0 0
      %525 = vmatprep.subr.bf16.mxu0 0
      %526 = vmatpush2.bf16.msra.mxu0 0
      %527 = vmatprep.subr.bf16.mxu0 0
      %528 = vmatpush2.bf16.msra.mxu0 0
      %529 = vmatprep.subr.bf16.mxu0 0
      %530 = vmatpush2.bf16.msra.mxu0 0
      %531 = vmatprep.mubr.bf16.mxu0 0
      %532 = vmatmul.mubr.bf16.gmra.mxu0 %v404
      %v533 = vpop.f32.mrf.mxu0
      %v534 = vadd.f32 %v388, %v533
      %v535 = vpop.f32.mrf.mxu0
      %v536 = vpop.f32.mrf.mxu0
      %v537 = vadd.f32 %v388, %v536
      %v538 = vpop.f32.mrf.mxu0
      %539 = vmatprep.mubr.bf16.mxu0 0
      %540 = vmatmul.mubr.bf16.gmra.mxu0 %v407
      %v541 = vpop.f32.mrf.mxu0
      %v542 = vadd.f32 %v388, %v541
      %v543 = vpop.f32.mrf.mxu0
      %v544 = vpop.f32.mrf.mxu0
      %v545 = vadd.f32 %v388, %v544
      %v546 = vpop.f32.mrf.mxu0
      %547 = vmatprep.mubr.bf16.mxu0 0
      %548 = vmatmul.mubr.bf16.gmra.mxu0 %v410
      %v549 = vpop.f32.mrf.mxu0
      %v550 = vadd.f32 %v388, %v549
      %v551 = vpop.f32.mrf.mxu0
      %v552 = vpop.f32.mrf.mxu0
      %v553 = vadd.f32 %v388, %v552
      %v554 = vpop.f32.mrf.mxu0
      %555 = vmatprep.mubr.bf16.mxu0 0
      %556 = vmatmul.mubr.bf16.gmra.mxu0 %v413
      %v557 = vpop.f32.mrf.mxu0
      %v558 = vadd.f32 %v388, %v557
      %v559 = vpop.f32.mrf.mxu0
      %v560 = vpop.f32.mrf.mxu0
      %v561 = vadd.f32 %v388, %v560
      %v562 = vpop.f32.mrf.mxu0
      %563 = vmatprep.mubr.bf16.mxu0 0
      %564 = vmatmul.mubr.bf16.gmra.mxu0 %v416
      %v565 = vpop.f32.mrf.mxu0
      %v566 = vadd.f32 %v388, %v565
      %v567 = vpop.f32.mrf.mxu0
      %v568 = vpop.f32.mrf.mxu0
      %v569 = vadd.f32 %v388, %v568
      %v570 = vpop.f32.mrf.mxu0
      %571 = vmatprep.mubr.bf16.mxu0 0
      %572 = vmatmul.mubr.bf16.gmra.mxu0 %v419
      %v573 = vpop.f32.mrf.mxu0
      %v574 = vadd.f32 %v388, %v573
      %v575 = vpop.f32.mrf.mxu0
      %v576 = vpop.f32.mrf.mxu0
      %v577 = vadd.f32 %v388, %v576
      %v578 = vpop.f32.mrf.mxu0
      %579 = vmatprep.mubr.bf16.mxu0 0
      %580 = vmatmul.mubr.bf16.gmra.mxu0 %v422
      %v581 = vpop.f32.mrf.mxu0
      %v582 = vadd.f32 %v388, %v581
      %v583 = vpop.f32.mrf.mxu0
      %v584 = vpop.f32.mrf.mxu0
      %v585 = vadd.f32 %v388, %v584
      %v586 = vpop.f32.mrf.mxu0
      %587 = vmatprep.mubr.bf16.mxu0 0
      %588 = vmatmul.mubr.bf16.gmra.mxu0 %v425
      %v589 = vpop.f32.mrf.mxu0
      %v590 = vadd.f32 %v388, %v589
      %v591 = vpop.f32.mrf.mxu0
      %v592 = vpop.f32.mrf.mxu0
      %v593 = vadd.f32 %v388, %v592
      %v594 = vpop.f32.mrf.mxu0
      %595 = vmatprep.mubr.bf16.mxu0 0
      %596 = vmatmul.mubr.bf16.gmra.mxu0 %v428
      %v597 = vpop.f32.mrf.mxu0
      %v598 = vadd.f32 %v388, %v597
      %v599 = vpop.f32.mrf.mxu0
      %v600 = vpop.f32.mrf.mxu0
      %v601 = vadd.f32 %v388, %v600
      %v602 = vpop.f32.mrf.mxu0
      %603 = vmatprep.mubr.bf16.mxu0 0
      %604 = vmatmul.mubr.bf16.gmra.mxu0 %v431
      %v605 = vpop.f32.mrf.mxu0
      %v606 = vadd.f32 %v388, %v605
      %v607 = vpop.f32.mrf.mxu0
      %v608 = vpop.f32.mrf.mxu0
      %v609 = vadd.f32 %v388, %v608
      %v610 = vpop.f32.mrf.mxu0
      %611 = vmatprep.mubr.bf16.mxu0 0
      %612 = vmatmul.mubr.bf16.gmra.mxu0 %v434
      %v613 = vpop.f32.mrf.mxu0
      %v614 = vadd.f32 %v388, %v613
      %v615 = vpop.f32.mrf.mxu0
      %v616 = vpop.f32.mrf.mxu0
      %v617 = vadd.f32 %v388, %v616
      %v618 = vpop.f32.mrf.mxu0
      %619 = vmatprep.mubr.bf16.mxu0 0
      %620 = vmatmul.mubr.bf16.gmra.mxu0 %v437
      %v621 = vpop.f32.mrf.mxu0
      %v622 = vadd.f32 %v388, %v621
      %v623 = vpop.f32.mrf.mxu0
      %v624 = vpop.f32.mrf.mxu0
      %v625 = vadd.f32 %v388, %v624
      %v626 = vpop.f32.mrf.mxu0
      %627 = vmatprep.mubr.bf16.mxu0 0
      %628 = vmatmul.mubr.bf16.gmra.mxu0 %v440
      %v629 = vpop.f32.mrf.mxu0
      %v630 = vadd.f32 %v388, %v629
      %v631 = vpop.f32.mrf.mxu0
      %v632 = vpop.f32.mrf.mxu0
      %v633 = vadd.f32 %v388, %v632
      %v634 = vpop.f32.mrf.mxu0
      %635 = vmatprep.mubr.bf16.mxu0 0
      %636 = vmatmul.mubr.bf16.gmra.mxu0 %v443
      %v637 = vpop.f32.mrf.mxu0
      %v638 = vadd.f32 %v388, %v637
      %v639 = vpop.f32.mrf.mxu0
      %v640 = vpop.f32.mrf.mxu0
      %v641 = vadd.f32 %v388, %v640
      %v642 = vpop.f32.mrf.mxu0
      %643 = vmatprep.mubr.bf16.mxu0 0
      %644 = vmatmul.mubr.bf16.gmra.mxu0 %v446
      %v645 = vpop.f32.mrf.mxu0
      %v646 = vadd.f32 %v388, %v645
      %v647 = vpop.f32.mrf.mxu0
      %v648 = vpop.f32.mrf.mxu0
      %v649 = vadd.f32 %v388, %v648
      %v650 = vpop.f32.mrf.mxu0
      %651 = vmatprep.mubr.bf16.mxu0 0
      %652 = vmatmul.mubr.bf16.gmra.mxu0 %v449
      %v653 = vpop.f32.mrf.mxu0
      %v654 = vadd.f32 %v388, %v653
      %v655 = vpop.f32.mrf.mxu0
      %v656 = vpop.f32.mrf.mxu0
      %v657 = vadd.f32 %v388, %v656
      %v658 = vpop.f32.mrf.mxu0
      %659 = vmatprep.mubr.bf16.mxu0 0
      %660 = vmatmul.mubr.bf16.gmra.mxu0 %v452
      %v661 = vpop.f32.mrf.mxu0
      %v662 = vadd.f32 %v388, %v661
      %v663 = vpop.f32.mrf.mxu0
      %v664 = vpop.f32.mrf.mxu0
      %v665 = vadd.f32 %v388, %v664
      %v666 = vpop.f32.mrf.mxu0
      %667 = vmatprep.mubr.bf16.mxu0 0
      %668 = vmatmul.mubr.bf16.gmra.mxu0 %v455
      %v669 = vpop.f32.mrf.mxu0
      %v670 = vadd.f32 %v388, %v669
      %v671 = vpop.f32.mrf.mxu0
      %v672 = vpop.f32.mrf.mxu0
      %v673 = vadd.f32 %v388, %v672
      %v674 = vpop.f32.mrf.mxu0
      %675 = vmatprep.mubr.bf16.mxu0 0
      %676 = vmatmul.mubr.bf16.gmra.mxu0 %v458
      %v677 = vpop.f32.mrf.mxu0
      %v678 = vadd.f32 %v388, %v677
      %v679 = vpop.f32.mrf.mxu0
      %v680 = vpop.f32.mrf.mxu0
      %v681 = vadd.f32 %v388, %v680
      %v682 = vpop.f32.mrf.mxu0
      %683 = vmatprep.mubr.bf16.mxu0 0
      %684 = vmatmul.mubr.bf16.gmra.mxu0 %v461
      %v685 = vpop.f32.mrf.mxu0
      %v686 = vadd.f32 %v388, %v685
      %v687 = vpop.f32.mrf.mxu0
      %v688 = vpop.f32.mrf.mxu0
      %v689 = vadd.f32 %v388, %v688
      %v690 = vpop.f32.mrf.mxu0
      %691 = vmatprep.mubr.bf16.mxu0 0
      %692 = vmatmul.mubr.bf16.gmra.mxu0 %v464
      %v693 = vpop.f32.mrf.mxu0
      %v694 = vadd.f32 %v388, %v693
      %v695 = vpop.f32.mrf.mxu0
      %v696 = vpop.f32.mrf.mxu0
      %v697 = vadd.f32 %v388, %v696
      %v698 = vpop.f32.mrf.mxu0
      %699 = vmatprep.mubr.bf16.mxu0 0
      %700 = vmatmul.mubr.bf16.gmra.mxu0 %v467
      %v701 = vpop.f32.mrf.mxu0
      %v702 = vadd.f32 %v388, %v701
      %v703 = vpop.f32.mrf.mxu0
      %v704 = vpop.f32.mrf.mxu0
      %v705 = vadd.f32 %v388, %v704
      %v706 = vpop.f32.mrf.mxu0
      %707 = vmatprep.mubr.bf16.mxu0 0
      %708 = vmatmul.mubr.bf16.gmra.mxu0 %v470
      %v709 = vpop.f32.mrf.mxu0
      %v710 = vadd.f32 %v388, %v709
      %v711 = vpop.f32.mrf.mxu0
      %v712 = vpop.f32.mrf.mxu0
      %v713 = vadd.f32 %v388, %v712
      %v714 = vpop.f32.mrf.mxu0
      %715 = vmatprep.mubr.bf16.mxu0 0
      %716 = vmatmul.mubr.bf16.gmra.mxu0 %v473
      %v717 = vpop.f32.mrf.mxu0
      %v718 = vadd.f32 %v388, %v717
      %v719 = vpop.f32.mrf.mxu0
      %v720 = vpop.f32.mrf.mxu0
      %v721 = vadd.f32 %v388, %v720
      %v722 = vpop.f32.mrf.mxu0
      %723 = vmatprep.mubr.bf16.mxu0 0
      %724 = vmatmul.mubr.bf16.gmra.mxu0 %v476
      %v725 = vpop.f32.mrf.mxu0
      %v726 = vadd.f32 %v388, %v725
      %v727 = vpop.f32.mrf.mxu0
      %v728 = vpop.f32.mrf.mxu0
      %v729 = vadd.f32 %v388, %v728
      %v730 = vpop.f32.mrf.mxu0
      %731 = vmatprep.mubr.bf16.mxu0 0
      %732 = vmatmul.mubr.bf16.gmra.mxu0 %v479
      %v733 = vpop.f32.mrf.mxu0
      %v734 = vadd.f32 %v388, %v733
      %v735 = vpop.f32.mrf.mxu0
      %v736 = vpop.f32.mrf.mxu0
      %v737 = vadd.f32 %v388, %v736
      %v738 = vpop.f32.mrf.mxu0
      %739 = vmatprep.mubr.bf16.mxu0 0
      %740 = vmatmul.mubr.bf16.gmra.mxu0 %v482
      %v741 = vpop.f32.mrf.mxu0
      %v742 = vadd.f32 %v388, %v741
      %v743 = vpop.f32.mrf.mxu0
      %v744 = vpop.f32.mrf.mxu0
      %v745 = vadd.f32 %v388, %v744
      %v746 = vpop.f32.mrf.mxu0
      %747 = vmatprep.mubr.bf16.mxu0 0
      %748 = vmatmul.mubr.bf16.gmra.mxu0 %v485
      %v749 = vpop.f32.mrf.mxu0
      %v750 = vadd.f32 %v388, %v749
      %v751 = vpop.f32.mrf.mxu0
      %v752 = vpop.f32.mrf.mxu0
      %v753 = vadd.f32 %v388, %v752
      %v754 = vpop.f32.mrf.mxu0
      %755 = vmatprep.mubr.bf16.mxu0 0
      %756 = vmatmul.mubr.bf16.gmra.mxu0 %v488
      %v757 = vpop.f32.mrf.mxu0
      %v758 = vadd.f32 %v388, %v757
      %v759 = vpop.f32.mrf.mxu0
      %v760 = vpop.f32.mrf.mxu0
      %v761 = vadd.f32 %v388, %v760
      %v762 = vpop.f32.mrf.mxu0
      %763 = vmatprep.mubr.bf16.mxu0 0
      %764 = vmatmul.mubr.bf16.gmra.mxu0 %v491
      %v765 = vpop.f32.mrf.mxu0
      %v766 = vadd.f32 %v388, %v765
      %v767 = vpop.f32.mrf.mxu0
      %v768 = vpop.f32.mrf.mxu0
      %v769 = vadd.f32 %v388, %v768
      %v770 = vpop.f32.mrf.mxu0
      %771 = vmatprep.mubr.bf16.mxu0 0
      %772 = vmatmul.mubr.bf16.gmra.mxu0 %v494
      %v773 = vpop.f32.mrf.mxu0
      %v774 = vadd.f32 %v388, %v773
      %v775 = vpop.f32.mrf.mxu0
      %v776 = vpop.f32.mrf.mxu0
      %v777 = vadd.f32 %v388, %v776
      %v778 = vpop.f32.mrf.mxu0
      %779 = vmatprep.mubr.bf16.mxu0 0
      %780 = vmatmul.mubr.bf16.gmra.mxu0 %v497
      %v781 = vpop.f32.mrf.mxu0
      %v782 = vadd.f32 %v388, %v781
      %v783 = vpop.f32.mrf.mxu0
      %v784 = vpop.f32.mrf.mxu0
      %v785 = vadd.f32 %v388, %v784
      %v786 = vpop.f32.mrf.mxu0
      %787 = vdwg.mxu0
      %v788 = vtanh.pop %v534
      %v789 = vtanh.pop %v537
      %v790 = vtanh.pop %v542
      %v791 = vtanh.pop %v545
      %v792 = vtanh.pop %v550
      %v793 = vtanh.pop %v553
      %v794 = vtanh.pop %v558
      %v795 = vtanh.pop %v561
      %v796 = vtanh.pop %v566
      %v797 = vtanh.pop %v569
      %v798 = vtanh.pop %v574
      %v799 = vtanh.pop %v577
      %v800 = vtanh.pop %v582
      %v801 = vtanh.pop %v585
      %v802 = vtanh.pop %v590
      %v803 = vtanh.pop %v593
      %v804 = vtanh.pop %v598
      %v805 = vtanh.pop %v601
      %v806 = vtanh.pop %v606
      %v807 = vtanh.pop %v609
      %v808 = vtanh.pop %v614
      %v809 = vtanh.pop %v617
      %v810 = vtanh.pop %v622
      %v811 = vtanh.pop %v625
      %v812 = vtanh.pop %v630
      %v813 = vtanh.pop %v633
      %v814 = vtanh.pop %v638
      %v815 = vtanh.pop %v641
      %v816 = vtanh.pop %v646
      %v817 = vtanh.pop %v649
      %v818 = vtanh.pop %v654
      %v819 = vtanh.pop %v657
      %v820 = vtanh.pop %v662
      %v821 = vtanh.pop %v665
      %v822 = vtanh.pop %v670
      %v823 = vtanh.pop %v673
      %v824 = vtanh.pop %v678
      %v825 = vtanh.pop %v681
      %v826 = vtanh.pop %v686
      %v827 = vtanh.pop %v689
      %v828 = vtanh.pop %v694
      %v829 = vtanh.pop %v697
      %v830 = vtanh.pop %v702
      %v831 = vtanh.pop %v705
      %v832 = vtanh.pop %v710
      %v833 = vtanh.pop %v713
      %v834 = vtanh.pop %v718
      %v835 = vtanh.pop %v721
      %v836 = vtanh.pop %v726
      %v837 = vtanh.pop %v729
      %v838 = vtanh.pop %v734
      %v839 = vtanh.pop %v737
      %v840 = vtanh.pop %v742
      %v841 = vtanh.pop %v745
      %v842 = vtanh.pop %v750
      %v843 = vtanh.pop %v753
      %v844 = vtanh.pop %v758
      %v845 = vtanh.pop %v761
      %v846 = vtanh.pop %v766
      %v847 = vtanh.pop %v769
      %v848 = vtanh.pop %v774
      %v849 = vtanh.pop %v777
      %v850 = vtanh.pop %v782
      %v851 = vtanh.pop %v785
      %v852 = vpack.c.bf16 %v789, %v788
      %v853 = vpack.c.bf16 %v791, %v790
      %v854 = vpack.c.bf16 %v793, %v792
      %v855 = vpack.c.bf16 %v795, %v794
      %v856 = vpack.c.bf16 %v797, %v796
      %v857 = vpack.c.bf16 %v799, %v798
      %v858 = vpack.c.bf16 %v801, %v800
      %v859 = vpack.c.bf16 %v803, %v802
      %v860 = vpack.c.bf16 %v805, %v804
      %v861 = vpack.c.bf16 %v807, %v806
      %v862 = vpack.c.bf16 %v809, %v808
      %v863 = vpack.c.bf16 %v811, %v810
      %v864 = vpack.c.bf16 %v813, %v812
      %v865 = vpack.c.bf16 %v815, %v814
      %v866 = vpack.c.bf16 %v817, %v816
      %v867 = vpack.c.bf16 %v819, %v818
      %v868 = vpack.c.bf16 %v821, %v820
      %v869 = vpack.c.bf16 %v823, %v822
      %v870 = vpack.c.bf16 %v825, %v824
      %v871 = vpack.c.bf16 %v827, %v826
      %v872 = vpack.c.bf16 %v829, %v828
      %v873 = vpack.c.bf16 %v831, %v830
      %v874 = vpack.c.bf16 %v833, %v832
      %v875 = vpack.c.bf16 %v835, %v834
      %v876 = vpack.c.bf16 %v837, %v836
      %v877 = vpack.c.bf16 %v839, %v838
      %v878 = vpack.c.bf16 %v841, %v840
      %v879 = vpack.c.bf16 %v843, %v842
      %v880 = vpack.c.bf16 %v845, %v844
      %v881 = vpack.c.bf16 %v847, %v846
      %v882 = vpack.c.bf16 %v849, %v848
      %v883 = vpack.c.bf16 %v851, %v850
      %v884 = vld [vmem:[%s3] sm:$0xf]
      %v885 = vld [vmem:[%s3 + $0x4] sm:$0xf]
      %v886 = vld [vmem:[%s3 + $0x8] sm:$0xf]
      %v887 = vld [vmem:[%s3 + $0xc] sm:$0xf]
      %v888 = vld [vmem:[%s3 + $0x10] sm:$0xf]
      %v889 = vld [vmem:[%s3 + $0x14] sm:$0xf]
      %v890 = vld [vmem:[%s3 + $0x18] sm:$0xf]
      %v891 = vld [vmem:[%s3 + $0x1c] sm:$0xf]
      %v892 = vld [vmem:[%s4] sm:$0x1]
      %v894 = vlaneseq
      %v895 = vshrl.u32 %v894, 7
      %v896 = vsub.s32 0, %v895
      %v897 = vrot.slane %v892, %v896
      %v907 = vunpack.c.l.b16 %v884
      %v908 = vunpack.c.l.b16 %v885
      %v909 = vunpack.c.l.b16 %v886
      %v910 = vunpack.c.l.b16 %v887
      %v911 = vunpack.c.l.b16 %v888
      %v912 = vunpack.c.l.b16 %v889
      %v913 = vunpack.c.l.b16 %v890
      %v914 = vunpack.c.l.b16 %v891
      %v915 = vpack.c.b16 %v908, %v907
      %v916 = vpack.c.b16 %v910, %v909
      %v917 = vpack.c.b16 %v912, %v911
      %v918 = vpack.c.b16 %v914, %v913
      %vm923 = vcmask 523264
      %v925 = vsel %vm923, %v852, 0
      %v928 = vsel %vm923, %v853, 0
      %v931 = vsel %vm923, %v854, 0
      %v934 = vsel %vm923, %v855, 0
      %v937 = vsel %vm923, %v856, 0
      %v940 = vsel %vm923, %v857, 0
      %v943 = vsel %vm923, %v858, 0
      %v946 = vsel %vm923, %v859, 0
      %v949 = vsel %vm923, %v860, 0
      %v952 = vsel %vm923, %v861, 0
      %v955 = vsel %vm923, %v862, 0
      %v958 = vsel %vm923, %v863, 0
      %v961 = vsel %vm923, %v864, 0
      %v964 = vsel %vm923, %v865, 0
      %v967 = vsel %vm923, %v866, 0
      %v970 = vsel %vm923, %v867, 0
      %v973 = vsel %vm923, %v868, 0
      %v976 = vsel %vm923, %v869, 0
      %v979 = vsel %vm923, %v870, 0
      %v982 = vsel %vm923, %v871, 0
      %v985 = vsel %vm923, %v872, 0
      %v988 = vsel %vm923, %v873, 0
      %v991 = vsel %vm923, %v874, 0
      %v994 = vsel %vm923, %v875, 0
      %v997 = vsel %vm923, %v876, 0
      %v1000 = vsel %vm923, %v877, 0
      %v1003 = vsel %vm923, %v878, 0
      %v1006 = vsel %vm923, %v879, 0
      %v1009 = vsel %vm923, %v880, 0
      %v1012 = vsel %vm923, %v881, 0
      %v1015 = vsel %vm923, %v882, 0
      %v1018 = vsel %vm923, %v883, 0
      %1020 = vmatprep.subr.bf16.mxu0 0
      %1021 = vmatpush1.bf16.msra.mxu0 0
      %1022 = vmatprep.subr.bf16.mxu0 0
      %1023 = vmatpush1.bf16.msra.mxu0 0
      %1024 = vmatprep.subr.bf16.mxu0 0
      %1025 = vmatpush1.bf16.msra.mxu0 0
      %1026 = vmatprep.subr.bf16.mxu0 0
      %1027 = vmatpush1.bf16.msra.mxu0 0
      %1028 = vmatprep.subr.bf16.mxu0 0
      %1029 = vmatpush1.bf16.msra.mxu0 %v918
      %1030 = vmatprep.subr.bf16.mxu0 0
      %1031 = vmatpush1.bf16.msra.mxu0 %v917
      %1032 = vmatprep.subr.bf16.mxu0 0
      %1033 = vmatpush1.bf16.msra.mxu0 %v916
      %1034 = vmatprep.subr.bf16.mxu0 0
      %1035 = vmatpush1.bf16.msra.mxu0 %v915
      %1036 = vmatprep.subr.bf16.mxu0 0
      %1037 = vmatpush2.bf16.msra.mxu0 0
      %1038 = vmatprep.subr.bf16.mxu0 0
      %1039 = vmatpush2.bf16.msra.mxu0 0
      %1040 = vmatprep.subr.bf16.mxu0 0
      %1041 = vmatpush2.bf16.msra.mxu0 0
      %1042 = vmatprep.subr.bf16.mxu0 0
      %1043 = vmatpush2.bf16.msra.mxu0 0
      %1044 = vmatprep.subr.bf16.mxu0 0
      %1045 = vmatpush2.bf16.msra.mxu0 0
      %1046 = vmatprep.subr.bf16.mxu0 0
      %1047 = vmatpush2.bf16.msra.mxu0 0
      %1048 = vmatprep.subr.bf16.mxu0 0
      %1049 = vmatpush2.bf16.msra.mxu0 0
      %1050 = vmatprep.subr.bf16.mxu0 0
      %1051 = vmatpush2.bf16.msra.mxu0 0
      %1052 = vmatprep.mubr.bf16.mxu0 0
      %1053 = vmatmul.mubr.bf16.gmra.mxu0 %v925
      %v1054 = vpop.f32.mrf.mxu0
      %v1055 = vadd.f32 %v897, %v1054
      %v1056 = vpop.f32.mrf.mxu0
      %v1057 = vpop.f32.mrf.mxu0
      %v1058 = vadd.f32 %v897, %v1057
      %v1059 = vpop.f32.mrf.mxu0
      %1060 = vmatprep.mubr.bf16.mxu0 0
      %1061 = vmatmul.mubr.bf16.gmra.mxu0 %v928
      %v1062 = vpop.f32.mrf.mxu0
      %v1063 = vadd.f32 %v897, %v1062
      %v1064 = vpop.f32.mrf.mxu0
      %v1065 = vpop.f32.mrf.mxu0
      %v1066 = vadd.f32 %v897, %v1065
      %v1067 = vpop.f32.mrf.mxu0
      %1068 = vmatprep.mubr.bf16.mxu0 0
      %1069 = vmatmul.mubr.bf16.gmra.mxu0 %v931
      %v1070 = vpop.f32.mrf.mxu0
      %v1071 = vadd.f32 %v897, %v1070
      %v1072 = vpop.f32.mrf.mxu0
      %v1073 = vpop.f32.mrf.mxu0
      %v1074 = vadd.f32 %v897, %v1073
      %v1075 = vpop.f32.mrf.mxu0
      %1076 = vmatprep.mubr.bf16.mxu0 0
      %1077 = vmatmul.mubr.bf16.gmra.mxu0 %v934
      %v1078 = vpop.f32.mrf.mxu0
      %v1079 = vadd.f32 %v897, %v1078
      %v1080 = vpop.f32.mrf.mxu0
      %v1081 = vpop.f32.mrf.mxu0
      %v1082 = vadd.f32 %v897, %v1081
      %v1083 = vpop.f32.mrf.mxu0
      %1084 = vmatprep.mubr.bf16.mxu0 0
      %1085 = vmatmul.mubr.bf16.gmra.mxu0 %v937
      %v1086 = vpop.f32.mrf.mxu0
      %v1087 = vadd.f32 %v897, %v1086
      %v1088 = vpop.f32.mrf.mxu0
      %v1089 = vpop.f32.mrf.mxu0
      %v1090 = vadd.f32 %v897, %v1089
      %v1091 = vpop.f32.mrf.mxu0
      %1092 = vmatprep.mubr.bf16.mxu0 0
      %1093 = vmatmul.mubr.bf16.gmra.mxu0 %v940
      %v1094 = vpop.f32.mrf.mxu0
      %v1095 = vadd.f32 %v897, %v1094
      %v1096 = vpop.f32.mrf.mxu0
      %v1097 = vpop.f32.mrf.mxu0
      %v1098 = vadd.f32 %v897, %v1097
      %v1099 = vpop.f32.mrf.mxu0
      %1100 = vmatprep.mubr.bf16.mxu0 0
      %1101 = vmatmul.mubr.bf16.gmra.mxu0 %v943
      %v1102 = vpop.f32.mrf.mxu0
      %v1103 = vadd.f32 %v897, %v1102
      %v1104 = vpop.f32.mrf.mxu0
      %v1105 = vpop.f32.mrf.mxu0
      %v1106 = vadd.f32 %v897, %v1105
      %v1107 = vpop.f32.mrf.mxu0
      %1108 = vmatprep.mubr.bf16.mxu0 0
      %1109 = vmatmul.mubr.bf16.gmra.mxu0 %v946
      %v1110 = vpop.f32.mrf.mxu0
      %v1111 = vadd.f32 %v897, %v1110
      %v1112 = vpop.f32.mrf.mxu0
      %v1113 = vpop.f32.mrf.mxu0
      %v1114 = vadd.f32 %v897, %v1113
      %v1115 = vpop.f32.mrf.mxu0
      %1116 = vmatprep.mubr.bf16.mxu0 0
      %1117 = vmatmul.mubr.bf16.gmra.mxu0 %v949
      %v1118 = vpop.f32.mrf.mxu0
      %v1119 = vadd.f32 %v897, %v1118
      %v1120 = vpop.f32.mrf.mxu0
      %v1121 = vpop.f32.mrf.mxu0
      %v1122 = vadd.f32 %v897, %v1121
      %v1123 = vpop.f32.mrf.mxu0
      %1124 = vmatprep.mubr.bf16.mxu0 0
      %1125 = vmatmul.mubr.bf16.gmra.mxu0 %v952
      %v1126 = vpop.f32.mrf.mxu0
      %v1127 = vadd.f32 %v897, %v1126
      %v1128 = vpop.f32.mrf.mxu0
      %v1129 = vpop.f32.mrf.mxu0
      %v1130 = vadd.f32 %v897, %v1129
      %v1131 = vpop.f32.mrf.mxu0
      %1132 = vmatprep.mubr.bf16.mxu0 0
      %1133 = vmatmul.mubr.bf16.gmra.mxu0 %v955
      %v1134 = vpop.f32.mrf.mxu0
      %v1135 = vadd.f32 %v897, %v1134
      %v1136 = vpop.f32.mrf.mxu0
      %v1137 = vpop.f32.mrf.mxu0
      %v1138 = vadd.f32 %v897, %v1137
      %v1139 = vpop.f32.mrf.mxu0
      %1140 = vmatprep.mubr.bf16.mxu0 0
      %1141 = vmatmul.mubr.bf16.gmra.mxu0 %v958
      %v1142 = vpop.f32.mrf.mxu0
      %v1143 = vadd.f32 %v897, %v1142
      %v1144 = vpop.f32.mrf.mxu0
      %v1145 = vpop.f32.mrf.mxu0
      %v1146 = vadd.f32 %v897, %v1145
      %v1147 = vpop.f32.mrf.mxu0
      %1148 = vmatprep.mubr.bf16.mxu0 0
      %1149 = vmatmul.mubr.bf16.gmra.mxu0 %v961
      %v1150 = vpop.f32.mrf.mxu0
      %v1151 = vadd.f32 %v897, %v1150
      %v1152 = vpop.f32.mrf.mxu0
      %v1153 = vpop.f32.mrf.mxu0
      %v1154 = vadd.f32 %v897, %v1153
      %v1155 = vpop.f32.mrf.mxu0
      %1156 = vmatprep.mubr.bf16.mxu0 0
      %1157 = vmatmul.mubr.bf16.gmra.mxu0 %v964
      %v1158 = vpop.f32.mrf.mxu0
      %v1159 = vadd.f32 %v897, %v1158
      %v1160 = vpop.f32.mrf.mxu0
      %v1161 = vpop.f32.mrf.mxu0
      %v1162 = vadd.f32 %v897, %v1161
      %v1163 = vpop.f32.mrf.mxu0
      %1164 = vmatprep.mubr.bf16.mxu0 0
      %1165 = vmatmul.mubr.bf16.gmra.mxu0 %v967
      %v1166 = vpop.f32.mrf.mxu0
      %v1167 = vadd.f32 %v897, %v1166
      %v1168 = vpop.f32.mrf.mxu0
      %v1169 = vpop.f32.mrf.mxu0
      %v1170 = vadd.f32 %v897, %v1169
      %v1171 = vpop.f32.mrf.mxu0
      %1172 = vmatprep.mubr.bf16.mxu0 0
      %1173 = vmatmul.mubr.bf16.gmra.mxu0 %v970
      %v1174 = vpop.f32.mrf.mxu0
      %v1175 = vadd.f32 %v897, %v1174
      %v1176 = vpop.f32.mrf.mxu0
      %v1177 = vpop.f32.mrf.mxu0
      %v1178 = vadd.f32 %v897, %v1177
      %v1179 = vpop.f32.mrf.mxu0
      %1180 = vmatprep.mubr.bf16.mxu0 0
      %1181 = vmatmul.mubr.bf16.gmra.mxu0 %v973
      %v1182 = vpop.f32.mrf.mxu0
      %v1183 = vadd.f32 %v897, %v1182
      %v1184 = vpop.f32.mrf.mxu0
      %v1185 = vpop.f32.mrf.mxu0
      %v1186 = vadd.f32 %v897, %v1185
      %v1187 = vpop.f32.mrf.mxu0
      %1188 = vmatprep.mubr.bf16.mxu0 0
      %1189 = vmatmul.mubr.bf16.gmra.mxu0 %v976
      %v1190 = vpop.f32.mrf.mxu0
      %v1191 = vadd.f32 %v897, %v1190
      %v1192 = vpop.f32.mrf.mxu0
      %v1193 = vpop.f32.mrf.mxu0
      %v1194 = vadd.f32 %v897, %v1193
      %v1195 = vpop.f32.mrf.mxu0
      %1196 = vmatprep.mubr.bf16.mxu0 0
      %1197 = vmatmul.mubr.bf16.gmra.mxu0 %v979
      %v1198 = vpop.f32.mrf.mxu0
      %v1199 = vadd.f32 %v897, %v1198
      %v1200 = vpop.f32.mrf.mxu0
      %v1201 = vpop.f32.mrf.mxu0
      %v1202 = vadd.f32 %v897, %v1201
      %v1203 = vpop.f32.mrf.mxu0
      %1204 = vmatprep.mubr.bf16.mxu0 0
      %1205 = vmatmul.mubr.bf16.gmra.mxu0 %v982
      %v1206 = vpop.f32.mrf.mxu0
      %v1207 = vadd.f32 %v897, %v1206
      %v1208 = vpop.f32.mrf.mxu0
      %v1209 = vpop.f32.mrf.mxu0
      %v1210 = vadd.f32 %v897, %v1209
      %v1211 = vpop.f32.mrf.mxu0
      %1212 = vmatprep.mubr.bf16.mxu0 0
      %1213 = vmatmul.mubr.bf16.gmra.mxu0 %v985
      %v1214 = vpop.f32.mrf.mxu0
      %v1215 = vadd.f32 %v897, %v1214
      %v1216 = vpop.f32.mrf.mxu0
      %v1217 = vpop.f32.mrf.mxu0
      %v1218 = vadd.f32 %v897, %v1217
      %v1219 = vpop.f32.mrf.mxu0
      %1220 = vmatprep.mubr.bf16.mxu0 0
      %1221 = vmatmul.mubr.bf16.gmra.mxu0 %v988
      %v1222 = vpop.f32.mrf.mxu0
      %v1223 = vadd.f32 %v897, %v1222
      %v1224 = vpop.f32.mrf.mxu0
      %v1225 = vpop.f32.mrf.mxu0
      %v1226 = vadd.f32 %v897, %v1225
      %v1227 = vpop.f32.mrf.mxu0
      %1228 = vmatprep.mubr.bf16.mxu0 0
      %1229 = vmatmul.mubr.bf16.gmra.mxu0 %v991
      %v1230 = vpop.f32.mrf.mxu0
      %v1231 = vadd.f32 %v897, %v1230
      %v1232 = vpop.f32.mrf.mxu0
      %v1233 = vpop.f32.mrf.mxu0
      %v1234 = vadd.f32 %v897, %v1233
      %v1235 = vpop.f32.mrf.mxu0
      %1236 = vmatprep.mubr.bf16.mxu0 0
      %1237 = vmatmul.mubr.bf16.gmra.mxu0 %v994
      %v1238 = vpop.f32.mrf.mxu0
      %v1239 = vadd.f32 %v897, %v1238
      %v1240 = vpop.f32.mrf.mxu0
      %v1241 = vpop.f32.mrf.mxu0
      %v1242 = vadd.f32 %v897, %v1241
      %v1243 = vpop.f32.mrf.mxu0
      %1244 = vmatprep.mubr.bf16.mxu0 0
      %1245 = vmatmul.mubr.bf16.gmra.mxu0 %v997
      %v1246 = vpop.f32.mrf.mxu0
      %v1247 = vadd.f32 %v897, %v1246
      %v1248 = vpop.f32.mrf.mxu0
      %v1249 = vpop.f32.mrf.mxu0
      %v1250 = vadd.f32 %v897, %v1249
      %v1251 = vpop.f32.mrf.mxu0
      %1252 = vmatprep.mubr.bf16.mxu0 0
      %1253 = vmatmul.mubr.bf16.gmra.mxu0 %v1000
      %v1254 = vpop.f32.mrf.mxu0
      %v1255 = vadd.f32 %v897, %v1254
      %v1256 = vpop.f32.mrf.mxu0
      %v1257 = vpop.f32.mrf.mxu0
      %v1258 = vadd.f32 %v897, %v1257
      %v1259 = vpop.f32.mrf.mxu0
      %1260 = vmatprep.mubr.bf16.mxu0 0
      %1261 = vmatmul.mubr.bf16.gmra.mxu0 %v1003
      %v1262 = vpop.f32.mrf.mxu0
      %v1263 = vadd.f32 %v897, %v1262
      %v1264 = vpop.f32.mrf.mxu0
      %v1265 = vpop.f32.mrf.mxu0
      %v1266 = vadd.f32 %v897, %v1265
      %v1267 = vpop.f32.mrf.mxu0
      %1268 = vmatprep.mubr.bf16.mxu0 0
      %1269 = vmatmul.mubr.bf16.gmra.mxu0 %v1006
      %v1270 = vpop.f32.mrf.mxu0
      %v1271 = vadd.f32 %v897, %v1270
      %v1272 = vpop.f32.mrf.mxu0
      %v1273 = vpop.f32.mrf.mxu0
      %v1274 = vadd.f32 %v897, %v1273
      %v1275 = vpop.f32.mrf.mxu0
      %1276 = vmatprep.mubr.bf16.mxu0 0
      %1277 = vmatmul.mubr.bf16.gmra.mxu0 %v1009
      %v1278 = vpop.f32.mrf.mxu0
      %v1279 = vadd.f32 %v897, %v1278
      %v1280 = vpop.f32.mrf.mxu0
      %v1281 = vpop.f32.mrf.mxu0
      %v1282 = vadd.f32 %v897, %v1281
      %v1283 = vpop.f32.mrf.mxu0
      %1284 = vmatprep.mubr.bf16.mxu0 0
      %1285 = vmatmul.mubr.bf16.gmra.mxu0 %v1012
      %v1286 = vpop.f32.mrf.mxu0
      %v1287 = vadd.f32 %v897, %v1286
      %v1288 = vpop.f32.mrf.mxu0
      %v1289 = vpop.f32.mrf.mxu0
      %v1290 = vadd.f32 %v897, %v1289
      %v1291 = vpop.f32.mrf.mxu0
      %1292 = vmatprep.mubr.bf16.mxu0 0
      %1293 = vmatmul.mubr.bf16.gmra.mxu0 %v1015
      %v1294 = vpop.f32.mrf.mxu0
      %v1295 = vadd.f32 %v897, %v1294
      %v1296 = vpop.f32.mrf.mxu0
      %v1297 = vpop.f32.mrf.mxu0
      %v1298 = vadd.f32 %v897, %v1297
      %v1299 = vpop.f32.mrf.mxu0
      %1300 = vmatprep.mubr.bf16.mxu0 0
      %1301 = vmatmul.mubr.bf16.gmra.mxu0 %v1018
      %v1302 = vpop.f32.mrf.mxu0
      %v1303 = vadd.f32 %v897, %v1302
      %v1304 = vpop.f32.mrf.mxu0
      %v1305 = vpop.f32.mrf.mxu0
      %v1306 = vadd.f32 %v897, %v1305
      %v1307 = vpop.f32.mrf.mxu0
      %1308 = vdwg.mxu0
      %v1309 = vtanh.pop %v1055
      %v1310 = vtanh.pop %v1058
      %v1311 = vtanh.pop %v1063
      %v1312 = vtanh.pop %v1066
      %v1313 = vtanh.pop %v1071
      %v1314 = vtanh.pop %v1074
      %v1315 = vtanh.pop %v1079
      %v1316 = vtanh.pop %v1082
      %v1317 = vtanh.pop %v1087
      %v1318 = vtanh.pop %v1090
      %v1319 = vtanh.pop %v1095
      %v1320 = vtanh.pop %v1098
      %v1321 = vtanh.pop %v1103
      %v1322 = vtanh.pop %v1106
      %v1323 = vtanh.pop %v1111
      %v1324 = vtanh.pop %v1114
      %v1325 = vtanh.pop %v1119
      %v1326 = vtanh.pop %v1122
      %v1327 = vtanh.pop %v1127
      %v1328 = vtanh.pop %v1130
      %v1329 = vtanh.pop %v1135
      %v1330 = vtanh.pop %v1138
      %v1331 = vtanh.pop %v1143
      %v1332 = vtanh.pop %v1146
      %v1333 = vtanh.pop %v1151
      %v1334 = vtanh.pop %v1154
      %v1335 = vtanh.pop %v1159
      %v1336 = vtanh.pop %v1162
      %v1337 = vtanh.pop %v1167
      %v1338 = vtanh.pop %v1170
      %v1339 = vtanh.pop %v1175
      %v1340 = vtanh.pop %v1178
      %v1341 = vtanh.pop %v1183
      %v1342 = vtanh.pop %v1186
      %v1343 = vtanh.pop %v1191
      %v1344 = vtanh.pop %v1194
      %v1345 = vtanh.pop %v1199
      %v1346 = vtanh.pop %v1202
      %v1347 = vtanh.pop %v1207
      %v1348 = vtanh.pop %v1210
      %v1349 = vtanh.pop %v1215
      %v1350 = vtanh.pop %v1218
      %v1351 = vtanh.pop %v1223
      %v1352 = vtanh.pop %v1226
      %v1353 = vtanh.pop %v1231
      %v1354 = vtanh.pop %v1234
      %v1355 = vtanh.pop %v1239
      %v1356 = vtanh.pop %v1242
      %v1357 = vtanh.pop %v1247
      %v1358 = vtanh.pop %v1250
      %v1359 = vtanh.pop %v1255
      %v1360 = vtanh.pop %v1258
      %v1361 = vtanh.pop %v1263
      %v1362 = vtanh.pop %v1266
      %v1363 = vtanh.pop %v1271
      %v1364 = vtanh.pop %v1274
      %v1365 = vtanh.pop %v1279
      %v1366 = vtanh.pop %v1282
      %v1367 = vtanh.pop %v1287
      %v1368 = vtanh.pop %v1290
      %v1369 = vtanh.pop %v1295
      %v1370 = vtanh.pop %v1298
      %v1371 = vtanh.pop %v1303
      %v1372 = vtanh.pop %v1306
      %v1373 = vpack.c.bf16 %v1310, %v1309
      %v1374 = vpack.c.bf16 %v1312, %v1311
      %v1375 = vpack.c.bf16 %v1314, %v1313
      %v1376 = vpack.c.bf16 %v1316, %v1315
      %v1377 = vpack.c.bf16 %v1318, %v1317
      %v1378 = vpack.c.bf16 %v1320, %v1319
      %v1379 = vpack.c.bf16 %v1322, %v1321
      %v1380 = vpack.c.bf16 %v1324, %v1323
      %v1381 = vpack.c.bf16 %v1326, %v1325
      %v1382 = vpack.c.bf16 %v1328, %v1327
      %v1383 = vpack.c.bf16 %v1330, %v1329
      %v1384 = vpack.c.bf16 %v1332, %v1331
      %v1385 = vpack.c.bf16 %v1334, %v1333
      %v1386 = vpack.c.bf16 %v1336, %v1335
      %v1387 = vpack.c.bf16 %v1338, %v1337
      %v1388 = vpack.c.bf16 %v1340, %v1339
      %v1389 = vpack.c.bf16 %v1342, %v1341
      %v1390 = vpack.c.bf16 %v1344, %v1343
      %v1391 = vpack.c.bf16 %v1346, %v1345
      %v1392 = vpack.c.bf16 %v1348, %v1347
      %v1393 = vpack.c.bf16 %v1350, %v1349
      %v1394 = vpack.c.bf16 %v1352, %v1351
      %v1395 = vpack.c.bf16 %v1354, %v1353
      %v1396 = vpack.c.bf16 %v1356, %v1355
      %v1397 = vpack.c.bf16 %v1358, %v1357
      %v1398 = vpack.c.bf16 %v1360, %v1359
      %v1399 = vpack.c.bf16 %v1362, %v1361
      %v1400 = vpack.c.bf16 %v1364, %v1363
      %v1401 = vpack.c.bf16 %v1366, %v1365
      %v1402 = vpack.c.bf16 %v1368, %v1367
      %v1403 = vpack.c.bf16 %v1370, %v1369
      %v1404 = vpack.c.bf16 %v1372, %v1371
      %v1405 = vld [vmem:[%s5] sm:$0xf]
      %v1406 = vld [vmem:[%s5 + $0x4] sm:$0xf]
      %v1407 = vld [vmem:[%s5 + $0x8] sm:$0xf]
      %v1408 = vld [vmem:[%s5 + $0xc] sm:$0xf]
      %v1409 = vld [vmem:[%s5 + $0x10] sm:$0xf]
      %v1410 = vld [vmem:[%s5 + $0x14] sm:$0xf]
      %v1411 = vld [vmem:[%s5 + $0x18] sm:$0xf]
      %v1412 = vld [vmem:[%s5 + $0x1c] sm:$0xf]
      %v1421 = vunpack.c.l.b16 %v1405
      %v1422 = vunpack.c.l.b16 %v1406
      %v1423 = vunpack.c.l.b16 %v1407
      %v1424 = vunpack.c.l.b16 %v1408
      %v1425 = vunpack.c.l.b16 %v1409
      %v1426 = vunpack.c.l.b16 %v1410
      %v1427 = vunpack.c.l.b16 %v1411
      %v1428 = vunpack.c.l.b16 %v1412
      %v1429 = vpack.c.b16 %v1422, %v1421
      %v1430 = vpack.c.b16 %v1424, %v1423
      %v1431 = vpack.c.b16 %v1426, %v1425
      %v1432 = vpack.c.b16 %v1428, %v1427
      %v1438 = vsel %vm923, %v1373, 0
      %v1441 = vsel %vm923, %v1374, 0
      %v1444 = vsel %vm923, %v1375, 0
      %v1447 = vsel %vm923, %v1376, 0
      %v1450 = vsel %vm923, %v1377, 0
      %v1453 = vsel %vm923, %v1378, 0
      %v1456 = vsel %vm923, %v1379, 0
      %v1459 = vsel %vm923, %v1380, 0
      %v1462 = vsel %vm923, %v1381, 0
      %v1465 = vsel %vm923, %v1382, 0
      %v1468 = vsel %vm923, %v1383, 0
      %v1471 = vsel %vm923, %v1384, 0
      %v1474 = vsel %vm923, %v1385, 0
      %v1477 = vsel %vm923, %v1386, 0
      %v1480 = vsel %vm923, %v1387, 0
      %v1483 = vsel %vm923, %v1388, 0
      %v1486 = vsel %vm923, %v1389, 0
      %v1489 = vsel %vm923, %v1390, 0
      %v1492 = vsel %vm923, %v1391, 0
      %v1495 = vsel %vm923, %v1392, 0
      %v1498 = vsel %vm923, %v1393, 0
      %v1501 = vsel %vm923, %v1394, 0
      %v1504 = vsel %vm923, %v1395, 0
      %v1507 = vsel %vm923, %v1396, 0
      %v1510 = vsel %vm923, %v1397, 0
      %v1513 = vsel %vm923, %v1398, 0
      %v1516 = vsel %vm923, %v1399, 0
      %v1519 = vsel %vm923, %v1400, 0
      %v1522 = vsel %vm923, %v1401, 0
      %v1525 = vsel %vm923, %v1402, 0
      %v1528 = vsel %vm923, %v1403, 0
      %v1531 = vsel %vm923, %v1404, 0
      %1533 = vmatprep.subr.bf16.mxu0 0
      %1534 = vmatpush1.bf16.msra.mxu0 0
      %1535 = vmatprep.subr.bf16.mxu0 0
      %1536 = vmatpush1.bf16.msra.mxu0 0
      %1537 = vmatprep.subr.bf16.mxu0 0
      %1538 = vmatpush1.bf16.msra.mxu0 0
      %1539 = vmatprep.subr.bf16.mxu0 0
      %1540 = vmatpush1.bf16.msra.mxu0 0
      %1541 = vmatprep.subr.bf16.mxu0 0
      %1542 = vmatpush1.bf16.msra.mxu0 %v1432
      %1543 = vmatprep.subr.bf16.mxu0 0
      %1544 = vmatpush1.bf16.msra.mxu0 %v1431
      %1545 = vmatprep.subr.bf16.mxu0 0
      %1546 = vmatpush1.bf16.msra.mxu0 %v1430
      %1547 = vmatprep.subr.bf16.mxu0 0
      %1548 = vmatpush1.bf16.msra.mxu0 %v1429
      %1549 = vmatprep.subr.bf16.mxu0 0
      %1550 = vmatpush2.bf16.msra.mxu0 0
      %1551 = vmatprep.subr.bf16.mxu0 0
      %1552 = vmatpush2.bf16.msra.mxu0 0
      %1553 = vmatprep.subr.bf16.mxu0 0
      %1554 = vmatpush2.bf16.msra.mxu0 0
      %1555 = vmatprep.subr.bf16.mxu0 0
      %1556 = vmatpush2.bf16.msra.mxu0 0
      %1557 = vmatprep.subr.bf16.mxu0 0
      %1558 = vmatpush2.bf16.msra.mxu0 0
      %1559 = vmatprep.subr.bf16.mxu0 0
      %1560 = vmatpush2.bf16.msra.mxu0 0
      %1561 = vmatprep.subr.bf16.mxu0 0
      %1562 = vmatpush2.bf16.msra.mxu0 0
      %1563 = vmatprep.subr.bf16.mxu0 0
      %1564 = vmatpush2.bf16.msra.mxu0 0
      %1565 = vmatprep.mubr.bf16.mxu0 0
      %1566 = vmatmul.mubr.bf16.gmra.mxu0 %v1438
      %v1567 = vpop.f32.mrf.mxu0
      %v1568 = vadd.f32 0.0, %v1567
      %v1569 = vpop.f32.mrf.mxu0
      %v1570 = vpop.f32.mrf.mxu0
      %v1571 = vadd.f32 0.0, %v1570
      %v1572 = vpop.f32.mrf.mxu0
      %1573 = vmatprep.mubr.bf16.mxu0 0
      %1574 = vmatmul.mubr.bf16.gmra.mxu0 %v1441
      %v1575 = vpop.f32.mrf.mxu0
      %v1576 = vadd.f32 0.0, %v1575
      %v1577 = vpop.f32.mrf.mxu0
      %v1578 = vpop.f32.mrf.mxu0
      %v1579 = vadd.f32 0.0, %v1578
      %v1580 = vpop.f32.mrf.mxu0
      %1581 = vmatprep.mubr.bf16.mxu0 0
      %1582 = vmatmul.mubr.bf16.gmra.mxu0 %v1444
      %v1583 = vpop.f32.mrf.mxu0
      %v1584 = vadd.f32 0.0, %v1583
      %v1585 = vpop.f32.mrf.mxu0
      %v1586 = vpop.f32.mrf.mxu0
      %v1587 = vadd.f32 0.0, %v1586
      %v1588 = vpop.f32.mrf.mxu0
      %1589 = vmatprep.mubr.bf16.mxu0 0
      %1590 = vmatmul.mubr.bf16.gmra.mxu0 %v1447
      %v1591 = vpop.f32.mrf.mxu0
      %v1592 = vadd.f32 0.0, %v1591
      %v1593 = vpop.f32.mrf.mxu0
      %v1594 = vpop.f32.mrf.mxu0
      %v1595 = vadd.f32 0.0, %v1594
      %v1596 = vpop.f32.mrf.mxu0
      %1597 = vmatprep.mubr.bf16.mxu0 0
      %1598 = vmatmul.mubr.bf16.gmra.mxu0 %v1450
      %v1599 = vpop.f32.mrf.mxu0
      %v1600 = vadd.f32 0.0, %v1599
      %v1601 = vpop.f32.mrf.mxu0
      %v1602 = vpop.f32.mrf.mxu0
      %v1603 = vadd.f32 0.0, %v1602
      %v1604 = vpop.f32.mrf.mxu0
      %1605 = vmatprep.mubr.bf16.mxu0 0
      %1606 = vmatmul.mubr.bf16.gmra.mxu0 %v1453
      %v1607 = vpop.f32.mrf.mxu0
      %v1608 = vadd.f32 0.0, %v1607
      %v1609 = vpop.f32.mrf.mxu0
      %v1610 = vpop.f32.mrf.mxu0
      %v1611 = vadd.f32 0.0, %v1610
      %v1612 = vpop.f32.mrf.mxu0
      %1613 = vmatprep.mubr.bf16.mxu0 0
      %1614 = vmatmul.mubr.bf16.gmra.mxu0 %v1456
      %v1615 = vpop.f32.mrf.mxu0
      %v1616 = vadd.f32 0.0, %v1615
      %v1617 = vpop.f32.mrf.mxu0
      %v1618 = vpop.f32.mrf.mxu0
      %v1619 = vadd.f32 0.0, %v1618
      %v1620 = vpop.f32.mrf.mxu0
      %1621 = vmatprep.mubr.bf16.mxu0 0
      %1622 = vmatmul.mubr.bf16.gmra.mxu0 %v1459
      %v1623 = vpop.f32.mrf.mxu0
      %v1624 = vadd.f32 0.0, %v1623
      %v1625 = vpop.f32.mrf.mxu0
      %v1626 = vpop.f32.mrf.mxu0
      %v1627 = vadd.f32 0.0, %v1626
      %v1628 = vpop.f32.mrf.mxu0
      %1629 = vmatprep.mubr.bf16.mxu0 0
      %1630 = vmatmul.mubr.bf16.gmra.mxu0 %v1462
      %v1631 = vpop.f32.mrf.mxu0
      %v1632 = vadd.f32 0.0, %v1631
      %v1633 = vpop.f32.mrf.mxu0
      %v1634 = vpop.f32.mrf.mxu0
      %v1635 = vadd.f32 0.0, %v1634
      %v1636 = vpop.f32.mrf.mxu0
      %1637 = vmatprep.mubr.bf16.mxu0 0
      %1638 = vmatmul.mubr.bf16.gmra.mxu0 %v1465
      %v1639 = vpop.f32.mrf.mxu0
      %v1640 = vadd.f32 0.0, %v1639
      %v1641 = vpop.f32.mrf.mxu0
      %v1642 = vpop.f32.mrf.mxu0
      %v1643 = vadd.f32 0.0, %v1642
      %v1644 = vpop.f32.mrf.mxu0
      %1645 = vmatprep.mubr.bf16.mxu0 0
      %1646 = vmatmul.mubr.bf16.gmra.mxu0 %v1468
      %v1647 = vpop.f32.mrf.mxu0
      %v1648 = vadd.f32 0.0, %v1647
      %v1649 = vpop.f32.mrf.mxu0
      %v1650 = vpop.f32.mrf.mxu0
      %v1651 = vadd.f32 0.0, %v1650
      %v1652 = vpop.f32.mrf.mxu0
      %1653 = vmatprep.mubr.bf16.mxu0 0
      %1654 = vmatmul.mubr.bf16.gmra.mxu0 %v1471
      %v1655 = vpop.f32.mrf.mxu0
      %v1656 = vadd.f32 0.0, %v1655
      %v1657 = vpop.f32.mrf.mxu0
      %v1658 = vpop.f32.mrf.mxu0
      %v1659 = vadd.f32 0.0, %v1658
      %v1660 = vpop.f32.mrf.mxu0
      %1661 = vmatprep.mubr.bf16.mxu0 0
      %1662 = vmatmul.mubr.bf16.gmra.mxu0 %v1474
      %v1663 = vpop.f32.mrf.mxu0
      %v1664 = vadd.f32 0.0, %v1663
      %v1665 = vpop.f32.mrf.mxu0
      %v1666 = vpop.f32.mrf.mxu0
      %v1667 = vadd.f32 0.0, %v1666
      %v1668 = vpop.f32.mrf.mxu0
      %1669 = vmatprep.mubr.bf16.mxu0 0
      %1670 = vmatmul.mubr.bf16.gmra.mxu0 %v1477
      %v1671 = vpop.f32.mrf.mxu0
      %v1672 = vadd.f32 0.0, %v1671
      %v1673 = vpop.f32.mrf.mxu0
      %v1674 = vpop.f32.mrf.mxu0
      %v1675 = vadd.f32 0.0, %v1674
      %v1676 = vpop.f32.mrf.mxu0
      %1677 = vmatprep.mubr.bf16.mxu0 0
      %1678 = vmatmul.mubr.bf16.gmra.mxu0 %v1480
      %v1679 = vpop.f32.mrf.mxu0
      %v1680 = vadd.f32 0.0, %v1679
      %v1681 = vpop.f32.mrf.mxu0
      %v1682 = vpop.f32.mrf.mxu0
      %v1683 = vadd.f32 0.0, %v1682
      %v1684 = vpop.f32.mrf.mxu0
      %1685 = vmatprep.mubr.bf16.mxu0 0
      %1686 = vmatmul.mubr.bf16.gmra.mxu0 %v1483
      %v1687 = vpop.f32.mrf.mxu0
      %v1688 = vadd.f32 0.0, %v1687
      %v1689 = vpop.f32.mrf.mxu0
      %v1690 = vpop.f32.mrf.mxu0
      %v1691 = vadd.f32 0.0, %v1690
      %v1692 = vpop.f32.mrf.mxu0
      %1693 = vmatprep.mubr.bf16.mxu0 0
      %1694 = vmatmul.mubr.bf16.gmra.mxu0 %v1486
      %v1695 = vpop.f32.mrf.mxu0
      %v1696 = vadd.f32 0.0, %v1695
      %v1697 = vpop.f32.mrf.mxu0
      %v1698 = vpop.f32.mrf.mxu0
      %v1699 = vadd.f32 0.0, %v1698
      %v1700 = vpop.f32.mrf.mxu0
      %1701 = vmatprep.mubr.bf16.mxu0 0
      %1702 = vmatmul.mubr.bf16.gmra.mxu0 %v1489
      %v1703 = vpop.f32.mrf.mxu0
      %v1704 = vadd.f32 0.0, %v1703
      %v1705 = vpop.f32.mrf.mxu0
      %v1706 = vpop.f32.mrf.mxu0
      %v1707 = vadd.f32 0.0, %v1706
      %v1708 = vpop.f32.mrf.mxu0
      %1709 = vmatprep.mubr.bf16.mxu0 0
      %1710 = vmatmul.mubr.bf16.gmra.mxu0 %v1492
      %v1711 = vpop.f32.mrf.mxu0
      %v1712 = vadd.f32 0.0, %v1711
      %v1713 = vpop.f32.mrf.mxu0
      %v1714 = vpop.f32.mrf.mxu0
      %v1715 = vadd.f32 0.0, %v1714
      %v1716 = vpop.f32.mrf.mxu0
      %1717 = vmatprep.mubr.bf16.mxu0 0
      %1718 = vmatmul.mubr.bf16.gmra.mxu0 %v1495
      %v1719 = vpop.f32.mrf.mxu0
      %v1720 = vadd.f32 0.0, %v1719
      %v1721 = vpop.f32.mrf.mxu0
      %v1722 = vpop.f32.mrf.mxu0
      %v1723 = vadd.f32 0.0, %v1722
      %v1724 = vpop.f32.mrf.mxu0
      %1725 = vmatprep.mubr.bf16.mxu0 0
      %1726 = vmatmul.mubr.bf16.gmra.mxu0 %v1498
      %v1727 = vpop.f32.mrf.mxu0
      %v1728 = vadd.f32 0.0, %v1727
      %v1729 = vpop.f32.mrf.mxu0
      %v1730 = vpop.f32.mrf.mxu0
      %v1731 = vadd.f32 0.0, %v1730
      %v1732 = vpop.f32.mrf.mxu0
      %1733 = vmatprep.mubr.bf16.mxu0 0
      %1734 = vmatmul.mubr.bf16.gmra.mxu0 %v1501
      %v1735 = vpop.f32.mrf.mxu0
      %v1736 = vadd.f32 0.0, %v1735
      %v1737 = vpop.f32.mrf.mxu0
      %v1738 = vpop.f32.mrf.mxu0
      %v1739 = vadd.f32 0.0, %v1738
      %v1740 = vpop.f32.mrf.mxu0
      %1741 = vmatprep.mubr.bf16.mxu0 0
      %1742 = vmatmul.mubr.bf16.gmra.mxu0 %v1504
      %v1743 = vpop.f32.mrf.mxu0
      %v1744 = vadd.f32 0.0, %v1743
      %v1745 = vpop.f32.mrf.mxu0
      %v1746 = vpop.f32.mrf.mxu0
      %v1747 = vadd.f32 0.0, %v1746
      %v1748 = vpop.f32.mrf.mxu0
      %1749 = vmatprep.mubr.bf16.mxu0 0
      %1750 = vmatmul.mubr.bf16.gmra.mxu0 %v1507
      %v1751 = vpop.f32.mrf.mxu0
      %v1752 = vadd.f32 0.0, %v1751
      %v1753 = vpop.f32.mrf.mxu0
      %v1754 = vpop.f32.mrf.mxu0
      %v1755 = vadd.f32 0.0, %v1754
      %v1756 = vpop.f32.mrf.mxu0
      %1757 = vmatprep.mubr.bf16.mxu0 0
      %1758 = vmatmul.mubr.bf16.gmra.mxu0 %v1510
      %v1759 = vpop.f32.mrf.mxu0
      %v1760 = vadd.f32 0.0, %v1759
      %v1761 = vpop.f32.mrf.mxu0
      %v1762 = vpop.f32.mrf.mxu0
      %v1763 = vadd.f32 0.0, %v1762
      %v1764 = vpop.f32.mrf.mxu0
      %1765 = vmatprep.mubr.bf16.mxu0 0
      %1766 = vmatmul.mubr.bf16.gmra.mxu0 %v1513
      %v1767 = vpop.f32.mrf.mxu0
      %v1768 = vadd.f32 0.0, %v1767
      %v1769 = vpop.f32.mrf.mxu0
      %v1770 = vpop.f32.mrf.mxu0
      %v1771 = vadd.f32 0.0, %v1770
      %v1772 = vpop.f32.mrf.mxu0
      %1773 = vmatprep.mubr.bf16.mxu0 0
      %1774 = vmatmul.mubr.bf16.gmra.mxu0 %v1516
      %v1775 = vpop.f32.mrf.mxu0
      %v1776 = vadd.f32 0.0, %v1775
      %v1777 = vpop.f32.mrf.mxu0
      %v1778 = vpop.f32.mrf.mxu0
      %v1779 = vadd.f32 0.0, %v1778
      %v1780 = vpop.f32.mrf.mxu0
      %1781 = vmatprep.mubr.bf16.mxu0 0
      %1782 = vmatmul.mubr.bf16.gmra.mxu0 %v1519
      %v1783 = vpop.f32.mrf.mxu0
      %v1784 = vadd.f32 0.0, %v1783
      %v1785 = vpop.f32.mrf.mxu0
      %v1786 = vpop.f32.mrf.mxu0
      %v1787 = vadd.f32 0.0, %v1786
      %v1788 = vpop.f32.mrf.mxu0
      %1789 = vmatprep.mubr.bf16.mxu0 0
      %1790 = vmatmul.mubr.bf16.gmra.mxu0 %v1522
      %v1791 = vpop.f32.mrf.mxu0
      %v1792 = vadd.f32 0.0, %v1791
      %v1793 = vpop.f32.mrf.mxu0
      %v1794 = vpop.f32.mrf.mxu0
      %v1795 = vadd.f32 0.0, %v1794
      %v1796 = vpop.f32.mrf.mxu0
      %1797 = vmatprep.mubr.bf16.mxu0 0
      %1798 = vmatmul.mubr.bf16.gmra.mxu0 %v1525
      %v1799 = vpop.f32.mrf.mxu0
      %v1800 = vadd.f32 0.0, %v1799
      %v1801 = vpop.f32.mrf.mxu0
      %v1802 = vpop.f32.mrf.mxu0
      %v1803 = vadd.f32 0.0, %v1802
      %v1804 = vpop.f32.mrf.mxu0
      %1805 = vmatprep.mubr.bf16.mxu0 0
      %1806 = vmatmul.mubr.bf16.gmra.mxu0 %v1528
      %v1807 = vpop.f32.mrf.mxu0
      %v1808 = vadd.f32 0.0, %v1807
      %v1809 = vpop.f32.mrf.mxu0
      %v1810 = vpop.f32.mrf.mxu0
      %v1811 = vadd.f32 0.0, %v1810
      %v1812 = vpop.f32.mrf.mxu0
      %1813 = vmatprep.mubr.bf16.mxu0 0
      %1814 = vmatmul.mubr.bf16.gmra.mxu0 %v1531
      %v1815 = vpop.f32.mrf.mxu0
      %v1816 = vadd.f32 0.0, %v1815
      %v1817 = vpop.f32.mrf.mxu0
      %v1818 = vpop.f32.mrf.mxu0
      %v1819 = vadd.f32 0.0, %v1818
      %v1820 = vpop.f32.mrf.mxu0
      %1821 = vdwg.mxu0
      %v1822 = vld [vmem:[%s6] sm:$0x1]
      %v1824 = vlaneseq
      %v1825 = vshrl.u32 %v1824, 7
      %v1826 = vsub.s32 0, %v1825
      %v1827 = vrot.slane %v1822, %v1826
      %v1829 = vadd.f32 %v1568, %v1827
      %v1830 = vadd.f32 %v1571, %v1827
      %v1831 = vadd.f32 %v1576, %v1827
      %v1832 = vadd.f32 %v1579, %v1827
      %v1833 = vadd.f32 %v1584, %v1827
      %v1834 = vadd.f32 %v1587, %v1827
      %v1835 = vadd.f32 %v1592, %v1827
      %v1836 = vadd.f32 %v1595, %v1827
      %v1837 = vadd.f32 %v1600, %v1827
      %v1838 = vadd.f32 %v1603, %v1827
      %v1839 = vadd.f32 %v1608, %v1827
      %v1840 = vadd.f32 %v1611, %v1827
      %v1841 = vadd.f32 %v1616, %v1827
      %v1842 = vadd.f32 %v1619, %v1827
      %v1843 = vadd.f32 %v1624, %v1827
      %v1844 = vadd.f32 %v1627, %v1827
      %v1845 = vadd.f32 %v1632, %v1827
      %v1846 = vadd.f32 %v1635, %v1827
      %v1847 = vadd.f32 %v1640, %v1827
      %v1848 = vadd.f32 %v1643, %v1827
      %v1849 = vadd.f32 %v1648, %v1827
      %v1850 = vadd.f32 %v1651, %v1827
      %v1851 = vadd.f32 %v1656, %v1827
      %v1852 = vadd.f32 %v1659, %v1827
      %v1853 = vadd.f32 %v1664, %v1827
      %v1854 = vadd.f32 %v1667, %v1827
      %v1855 = vadd.f32 %v1672, %v1827
      %v1856 = vadd.f32 %v1675, %v1827
      %v1857 = vadd.f32 %v1680, %v1827
      %v1858 = vadd.f32 %v1683, %v1827
      %v1859 = vadd.f32 %v1688, %v1827
      %v1860 = vadd.f32 %v1691, %v1827
      %v1861 = vadd.f32 %v1696, %v1827
      %v1862 = vadd.f32 %v1699, %v1827
      %v1863 = vadd.f32 %v1704, %v1827
      %v1864 = vadd.f32 %v1707, %v1827
      %v1865 = vadd.f32 %v1712, %v1827
      %v1866 = vadd.f32 %v1715, %v1827
      %v1867 = vadd.f32 %v1720, %v1827
      %v1868 = vadd.f32 %v1723, %v1827
      %v1869 = vadd.f32 %v1728, %v1827
      %v1870 = vadd.f32 %v1731, %v1827
      %v1871 = vadd.f32 %v1736, %v1827
      %v1872 = vadd.f32 %v1739, %v1827
      %v1873 = vadd.f32 %v1744, %v1827
      %v1874 = vadd.f32 %v1747, %v1827
      %v1875 = vadd.f32 %v1752, %v1827
      %v1876 = vadd.f32 %v1755, %v1827
      %v1877 = vadd.f32 %v1760, %v1827
      %v1878 = vadd.f32 %v1763, %v1827
      %v1879 = vadd.f32 %v1768, %v1827
      %v1880 = vadd.f32 %v1771, %v1827
      %v1881 = vadd.f32 %v1776, %v1827
      %v1882 = vadd.f32 %v1779, %v1827
      %v1883 = vadd.f32 %v1784, %v1827
      %v1884 = vadd.f32 %v1787, %v1827
      %v1885 = vadd.f32 %v1792, %v1827
      %v1886 = vadd.f32 %v1795, %v1827
      %v1887 = vadd.f32 %v1800, %v1827
      %v1888 = vadd.f32 %v1803, %v1827
      %v1889 = vadd.f32 %v1808, %v1827
      %v1890 = vadd.f32 %v1811, %v1827
      %v1891 = vadd.f32 %v1816, %v1827
      %v1892 = vadd.f32 %v1819, %v1827
      %vm1893 = vcmask 31744
      %1894 = vst.msk [vmem:[%s280] sm:$0xff] %vm1893, %v1829
      %1895 = vst.msk [vmem:[%s280 + $0x8] sm:$0xff] %vm1893, %v1830
      %1896 = vst.msk [vmem:[%s280 + $0x10] sm:$0xff] %vm1893, %v1831
      %1897 = vst.msk [vmem:[%s280 + $0x18] sm:$0xff] %vm1893, %v1832
      %1898 = vst.msk [vmem:[%s280 + $0x20] sm:$0xff] %vm1893, %v1833
      %1899 = vst.msk [vmem:[%s280 + $0x28] sm:$0xff] %vm1893, %v1834
      %1900 = vst.msk [vmem:[%s280 + $0x30] sm:$0xff] %vm1893, %v1835
      %1901 = vst.msk [vmem:[%s280 + $0x38] sm:$0xff] %vm1893, %v1836
      %1902 = vst.msk [vmem:[%s280 + $0x40] sm:$0xff] %vm1893, %v1837
      %1903 = vst.msk [vmem:[%s280 + $0x48] sm:$0xff] %vm1893, %v1838
      %1904 = vst.msk [vmem:[%s280 + $0x50] sm:$0xff] %vm1893, %v1839
      %1905 = vst.msk [vmem:[%s280 + $0x58] sm:$0xff] %vm1893, %v1840
      %1906 = vst.msk [vmem:[%s280 + $0x60] sm:$0xff] %vm1893, %v1841
      %1907 = vst.msk [vmem:[%s280 + $0x68] sm:$0xff] %vm1893, %v1842
      %1908 = vst.msk [vmem:[%s280 + $0x70] sm:$0xff] %vm1893, %v1843
      %1909 = vst.msk [vmem:[%s280 + $0x78] sm:$0xff] %vm1893, %v1844
      %1910 = vst.msk [vmem:[%s280 + $0x80] sm:$0xff] %vm1893, %v1845
      %1911 = vst.msk [vmem:[%s280 + $0x88] sm:$0xff] %vm1893, %v1846
      %1912 = vst.msk [vmem:[%s280 + $0x90] sm:$0xff] %vm1893, %v1847
      %1913 = vst.msk [vmem:[%s280 + $0x98] sm:$0xff] %vm1893, %v1848
      %1914 = vst.msk [vmem:[%s280 + $0xa0] sm:$0xff] %vm1893, %v1849
      %1915 = vst.msk [vmem:[%s280 + $0xa8] sm:$0xff] %vm1893, %v1850
      %1916 = vst.msk [vmem:[%s280 + $0xb0] sm:$0xff] %vm1893, %v1851
      %1917 = vst.msk [vmem:[%s280 + $0xb8] sm:$0xff] %vm1893, %v1852
      %1918 = vst.msk [vmem:[%s280 + $0xc0] sm:$0xff] %vm1893, %v1853
      %1919 = vst.msk [vmem:[%s280 + $0xc8] sm:$0xff] %vm1893, %v1854
      %1920 = vst.msk [vmem:[%s280 + $0xd0] sm:$0xff] %vm1893, %v1855
      %1921 = vst.msk [vmem:[%s280 + $0xd8] sm:$0xff] %vm1893, %v1856
      %1922 = vst.msk [vmem:[%s280 + $0xe0] sm:$0xff] %vm1893, %v1857
      %1923 = vst.msk [vmem:[%s280 + $0xe8] sm:$0xff] %vm1893, %v1858
      %1924 = vst.msk [vmem:[%s280 + $0xf0] sm:$0xff] %vm1893, %v1859
      %1925 = vst.msk [vmem:[%s280 + $0xf8] sm:$0xff] %vm1893, %v1860
      %1926 = vst.msk [vmem:[%s280 + $0x100] sm:$0xff] %vm1893, %v1861
      %1927 = vst.msk [vmem:[%s280 + $0x108] sm:$0xff] %vm1893, %v1862
      %1928 = vst.msk [vmem:[%s280 + $0x110] sm:$0xff] %vm1893, %v1863
      %1929 = vst.msk [vmem:[%s280 + $0x118] sm:$0xff] %vm1893, %v1864
      %1930 = vst.msk [vmem:[%s280 + $0x120] sm:$0xff] %vm1893, %v1865
      %1931 = vst.msk [vmem:[%s280 + $0x128] sm:$0xff] %vm1893, %v1866
      %1932 = vst.msk [vmem:[%s280 + $0x130] sm:$0xff] %vm1893, %v1867
      %1933 = vst.msk [vmem:[%s280 + $0x138] sm:$0xff] %vm1893, %v1868
      %1934 = vst.msk [vmem:[%s280 + $0x140] sm:$0xff] %vm1893, %v1869
      %1935 = vst.msk [vmem:[%s280 + $0x148] sm:$0xff] %vm1893, %v1870
      %1936 = vst.msk [vmem:[%s280 + $0x150] sm:$0xff] %vm1893, %v1871
      %1937 = vst.msk [vmem:[%s280 + $0x158] sm:$0xff] %vm1893, %v1872
      %1938 = vst.msk [vmem:[%s280 + $0x160] sm:$0xff] %vm1893, %v1873
      %1939 = vst.msk [vmem:[%s280 + $0x168] sm:$0xff] %vm1893, %v1874
      %1940 = vst.msk [vmem:[%s280 + $0x170] sm:$0xff] %vm1893, %v1875
      %1941 = vst.msk [vmem:[%s280 + $0x178] sm:$0xff] %vm1893, %v1876
      %1942 = vst.msk [vmem:[%s280 + $0x180] sm:$0xff] %vm1893, %v1877
      %1943 = vst.msk [vmem:[%s280 + $0x188] sm:$0xff] %vm1893, %v1878
      %1944 = vst.msk [vmem:[%s280 + $0x190] sm:$0xff] %vm1893, %v1879
      %1945 = vst.msk [vmem:[%s280 + $0x198] sm:$0xff] %vm1893, %v1880
      %1946 = vst.msk [vmem:[%s280 + $0x1a0] sm:$0xff] %vm1893, %v1881
      %1947 = vst.msk [vmem:[%s280 + $0x1a8] sm:$0xff] %vm1893, %v1882
      %1948 = vst.msk [vmem:[%s280 + $0x1b0] sm:$0xff] %vm1893, %v1883
      %1949 = vst.msk [vmem:[%s280 + $0x1b8] sm:$0xff] %vm1893, %v1884
      %1950 = vst.msk [vmem:[%s280 + $0x1c0] sm:$0xff] %vm1893, %v1885
      %1951 = vst.msk [vmem:[%s280 + $0x1c8] sm:$0xff] %vm1893, %v1886
      %1952 = vst.msk [vmem:[%s280 + $0x1d0] sm:$0xff] %vm1893, %v1887
      %1953 = vst.msk [vmem:[%s280 + $0x1d8] sm:$0xff] %vm1893, %v1888
      %1954 = vst.msk [vmem:[%s280 + $0x1e0] sm:$0xff] %vm1893, %v1889
      %1955 = vst.msk [vmem:[%s280 + $0x1e8] sm:$0xff] %vm1893, %v1890
      %1956 = vst.msk [vmem:[%s280 + $0x1f0] sm:$0xff] %vm1893, %v1891
      %1957 = vst.msk [vmem:[%s280 + $0x1f8] sm:$0xff] %vm1893, %v1892
      %s1958 = smul.u32 64, %s18
      %p1959 = scmp.lt.s32.totalorder %s1958, 127
      %s1960 = scalar_select %p1959, %s1958, 127
      %s1961 = smul.addr %s1960, 8
      %s1962 = scalar_lea.vmem %s7, %s1961
      // Predicated region
      $region49: #{tpu_custom_call.1} parent=47 // pred_check
        %p1963 = pneg %p188
      $region50: #{tpu_custom_call.1} parent=47 // pred_check_branch
        %1965 = sbr.rel (%p1963) target = $region52
      $region51: #{tpu_custom_call.1} parent=47 // pred_region
        %s1966 = smul.u32 64, %s18
      $region52: #{tpu_custom_call.1} parent=47 // pred_fallthru
        _
    $region48: #{tpu_custom_call.1} parent=5 // pred_fallthru
      _
    %p1967 = scmp.le.s32.totalorder 2, %s13
    // Predicated region
    $region53: #{tpu_custom_call.1} parent=5 // pred_check
      %p1968 = pneg %p1967
    $region54: #{tpu_custom_call.1} parent=5 // pred_check_branch
      %1970 = sbr.rel (%p1968) target = $region56
    $region55: #{tpu_custom_call.1} parent=5 // pred_region
      %s1971 = ssub.s32 %s13, 2
      // Predicated region
      $region57: #{tpu_custom_call.1} parent=55 // pred_check
        %p1972 = pneg %p194
      $region58: #{tpu_custom_call.1} parent=55 // pred_check_branch
        %1974 = sbr.rel (%p1972) target = $region60
      $region59: #{tpu_custom_call.1} parent=55 // pred_region
        %s1975 = smul.u32 64, %s19
        %p1976 = scmp.lt.s32.totalorder %s1975, 127
        %s1977 = scalar_select %p1976, %s1975, 127
        %s1978 = smul.addr %s1977, 8
        %s1979 = scalar_lea.vmem %s7, %s1978
      $region60: #{tpu_custom_call.1} parent=55 // pred_fallthru
        _
    $region56: #{tpu_custom_call.1} parent=5 // pred_fallthru
      _
  $region6: #{tpu_custom_call.1} parent=0 // loop_footer
    %s17 = sadd.s32 1, %s13
  $region7: #{tpu_custom_call.1} parent=0 // loop_footer_branch
    %12 = sbr.rel target = $region3
  $region8: #{tpu_custom_call.1} parent=0 // loop_exit
    _

</llo_original>
